<compile_context>
chip_gen: v7x
topology: tpu7x:2x2x1
jax: 0.10.0
libtpu: 0.0.40
codegen_flags: <defaults>
</compile_context>

<pallas_src>
import functools

import jax
import jax.numpy as jnp
from jax import lax
from jax.experimental import pallas as pl
from jax.experimental.pallas import tpu as pltpu

EPS = 1e-5                       # torch InstanceNorm3d default eps
_VMEM_LIMIT = 48 * 1024 * 1024   # safe on v7x (64 MiB), generous on v5e/v6e
_ROW_TILE = 1024                 # spatial positions per block, pointwise stages


def _lrelu(x, alpha):
    return jnp.where(x >= 0, x, alpha * x)


# ---------------------------------------------------------------------------
# Stage 1: 1x1x1 conv.  Reads the NCDHW input channel-major (folds the
# NCDHW->NDHWC boundary transpose into the kernel via a leading-axis
# contraction) and writes a channels-last bf16 activation plus per-tile IN1
# statistics.  Both grid axes are "parallel".
# ---------------------------------------------------------------------------
def _conv1_cm_kernel(x_ref, w_ref, y_ref, st_ref, *, S, bs):
    t = pl.program_id(1)
    x = x_ref[0].astype(jnp.float32)                        # (Cin, bs) channel-major
    # Contract the leading (channel) axis of both operands:  y = x^T @ w.
    y = lax.dot_general(x, w_ref[...],
                        dimension_numbers=(((0,), (0,)), ((), ())),
                        preferred_element_type=jnp.float32)  # (bs, Cout)
    y_ref[0] = y.astype(y_ref.dtype)

    if S % bs != 0:                                          # mask ragged tail rows
        row = lax.broadcasted_iota(jnp.int32, (bs, 1), 0)
        ym = jnp.where(t * bs + row < S, y, 0.0)
    else:
        ym = y
    st_ref[0, 0, 0:1, :] = jnp.sum(ym, axis=0, keepdims=True)
    st_ref[0, 0, 1:2, :] = jnp.sum(ym * ym, axis=0, keepdims=True)


def conv1_pointwise(x_cm, w, *, act_dtype):
    N, Cin, S = x_cm.shape
    Cout = w.shape[1]
    bs = S if S <= _ROW_TILE else _ROW_TILE
    T = pl.cdiv(S, bs)
    return pl.pallas_call(
        functools.partial(_conv1_cm_kernel, S=S, bs=bs),
        out_shape=(jax.ShapeDtypeStruct((N, S, Cout), act_dtype),
                   jax.ShapeDtypeStruct((N, T, 2, Cout), jnp.float32)),
        grid_spec=pltpu.PrefetchScalarGridSpec(
            num_scalar_prefetch=0,
            grid=(N, T),
            in_specs=[
                pl.BlockSpec((1, Cin, bs), lambda n, t: (n, 0, t)),
                pl.BlockSpec((Cin, Cout), lambda n, t: (0, 0)),
            ],
            out_specs=[
                pl.BlockSpec((1, bs, Cout), lambda n, t: (n, t, 0)),
                pl.BlockSpec((1, 1, 2, Cout), lambda n, t: (n, t, 0, 0)),
            ]),
        compiler_params=pltpu.CompilerParams(
            dimension_semantics=("parallel", "parallel"),
            vmem_limit_bytes=_VMEM_LIMIT),
    )(x_cm, w)


# ---------------------------------------------------------------------------
# Stage 2: IN1 + LReLU fused into the 3x3x3 conv.
#   Grid is (N, D+1).  At step t the kernel ingests depth slice min(t, D-1)
#   (zero-gated at t == D), normalizes + activates it and stores it into the
#   interior of a 3-slot rolling padded VMEM scratch; at steps t >= 1 it
#   produces output depth slice d = t-1 from the three resident slices with
#   one K = 9*P MXU contraction per kd, and accumulates IN2 sum / sumsq.
# ---------------------------------------------------------------------------
def _norm_act_conv3_kernel(y1_ref, sc_ref, sh_ref, w_ref, y2_ref, st_ref,
                           buf_ref, *, alpha, D, H, W):
    t = pl.program_id(1)

    @pl.when(t == 0)
    def _():
        buf_ref[...] = jnp.zeros_like(buf_ref)   # zero borders + slot used as d=-1 pad
        st_ref[...] = jnp.zeros_like(st_ref)

    # Ingest the incoming depth slice (clamped duplicate at t == D is gated to
    # zero so it acts as the d = D padding slice).
    a = y1_ref[0, 0].astype(jnp.float32)                     # (H, W, P)
    a = _lrelu(a * sc_ref[0] + sh_ref[0], alpha)
    a = jnp.where(t < D, a, 0.0)
    P = a.shape[-1]
    slot = t % 3
    for s in range(3):                                       # unrolled predicated store
        @pl.when(slot == s)
        def _(s=s):
            buf_ref[s, 1:H + 1, 1:W + 1, :] = a

    @pl.when(t >= 1)
    def _():
        def taps9(slab):                                     # slab: (H+2, W+2, P)
            vs = [slab[kh:kh + H, kw:kw + W, :].reshape(H * W, P)
                  for kh in range(3) for kw in range(3)]
            return jnp.concatenate(vs, axis=-1)              # (H*W, 9P)

        # kd = 0/1/2 use depth slices (t-2)/(t-1)/(t): slots (t+1)%3, (t+2)%3, t%3.
        parts = []
        for kd, off in ((0, 1), (1, 2), (2, 0)):
            slab = buf_ref[(t + off) % 3]
            parts.append(jnp.dot(taps9(slab), w_ref[kd],
                                 preferred_element_type=jnp.float32))
        y2 = parts[0] + parts[1] + parts[2]                  # (H*W, Cout) f32
        Cout = y2.shape[-1]
        y2_ref[0, 0] = y2.reshape(H, W, Cout).astype(y2_ref.dtype)

        st_ref[0, 0:1, :] = st_ref[0, 0:1, :] + jnp.sum(y2, axis=0, keepdims=True)
        st_ref[0, 1:2, :] = st_ref[0, 1:2, :] + jnp.sum(y2 * y2, axis=0,
                                                        keepdims=True)


def norm_act_conv3x3x3(y1_5d, scale, shift, w2_flat, *, alpha, act_dtype):
    N, D, H, W, P = y1_5d.shape
    Cout = w2_flat.shape[-1]
    return pl.pallas_call(
        functools.partial(_norm_act_conv3_kernel, alpha=alpha, D=D, H=H, W=W),
        out_shape=(jax.ShapeDtypeStruct((N, D, H, W, Cout), act_dtype),
                   jax.ShapeDtypeStruct((N, 2, Cout), jnp.float32)),
        grid_spec=pltpu.PrefetchScalarGridSpec(
            num_scalar_prefetch=0,
            grid=(N, D + 1),
            in_specs=[
                pl.BlockSpec((1, 1, H, W, P),
                             lambda n, t: (n, jnp.minimum(t, D - 1), 0, 0, 0)),
                pl.BlockSpec((1, 1, P), lambda n, t: (n, 0, 0)),
                pl.BlockSpec((1, 1, P), lambda n, t: (n, 0, 0)),
                pl.BlockSpec((3, 9 * P, Cout), lambda n, t: (0, 0, 0)),
            ],
            out_specs=[
                pl.BlockSpec((1, 1, H, W, Cout),
                             lambda n, t: (n, jnp.maximum(t - 1, 0), 0, 0, 0)),
                pl.BlockSpec((1, 2, Cout), lambda n, t: (n, 0, 0)),
            ],
            scratch_shapes=[pltpu.VMEM((3, H + 2, W + 2, P), jnp.float32)]),
        compiler_params=pltpu.CompilerParams(
            dimension_semantics=("parallel", "arbitrary"),
            vmem_limit_bytes=_VMEM_LIMIT),
    )(y1_5d, scale, shift, w2_flat)


# ---------------------------------------------------------------------------
# Stage 3: IN2 + LReLU fused into the 1x1x1 expansion conv.  Output is stored
# channel-major (spatial in lanes -> lane-dense stores); per-tile IN3 stats.
# ---------------------------------------------------------------------------
def _norm_act_conv1_cm_kernel(x_ref, sc_ref, sh_ref, w_ref, y_ref, st_ref,
                              *, alpha, S, bs):
    t = pl.program_id(1)
    x = x_ref[0].astype(jnp.float32)                         # (bs, P) channels-last
    x = _lrelu(x * sc_ref[0] + sh_ref[0], alpha)
    y = jnp.dot(x, w_ref[...], preferred_element_type=jnp.float32)   # (bs, Cout)

    if S % bs != 0:
        row = lax.broadcasted_iota(jnp.int32, (bs, 1), 0)
        ym = jnp.where(t * bs + row < S, y, 0.0)
    else:
        ym = y
    st_ref[0, 0, 0:1, :] = jnp.sum(ym, axis=0, keepdims=True)
    st_ref[0, 0, 1:2, :] = jnp.sum(ym * ym, axis=0, keepdims=True)

    y_ref[0] = y.T.astype(y_ref.dtype)                       # (Cout, bs) channel-major


def norm_act_conv1_cm(x_sm, scale, shift, w, *, alpha, act_dtype):
    N, S, P = x_sm.shape
    Cout = w.shape[1]
    bs = S if S <= _ROW_TILE else _ROW_TILE
    T = pl.cdiv(S, bs)
    return pl.pallas_call(
        functools.partial(_norm_act_conv1_cm_kernel, alpha=alpha, S=S, bs=bs),
        out_shape=(jax.ShapeDtypeStruct((N, Cout, S), act_dtype),
                   jax.ShapeDtypeStruct((N, T, 2, Cout), jnp.float32)),
        grid_spec=pltpu.PrefetchScalarGridSpec(
            num_scalar_prefetch=0,
            grid=(N, T),
            in_specs=[
                pl.BlockSpec((1, bs, P), lambda n, t: (n, t, 0)),
                pl.BlockSpec((1, 1, P), lambda n, t: (n, 0, 0)),
                pl.BlockSpec((1, 1, P), lambda n, t: (n, 0, 0)),
                pl.BlockSpec((P, Cout), lambda n, t: (0, 0)),
            ],
            out_specs=[
                pl.BlockSpec((1, Cout, bs), lambda n, t: (n, 0, t)),
                pl.BlockSpec((1, 1, 2, Cout), lambda n, t: (n, t, 0, 0)),
            ]),
        compiler_params=pltpu.CompilerParams(
            dimension_semantics=("parallel", "parallel"),
            vmem_limit_bytes=_VMEM_LIMIT),
    )(x_sm, scale, shift, w)


# ---------------------------------------------------------------------------
# Stage 4: IN3 + residual add + LReLU, fully channel-major -> the result is
# the module output in NCDHW layout (no XLA transpose).  Everything lane-dense.
# ---------------------------------------------------------------------------
def _norm_res_act_kernel(y_ref, sc_ref, sh_ref, r_ref, o_ref, *, alpha):
    y = y_ref[0].astype(jnp.float32)                         # (C, bs) channel-major
    out = y * sc_ref[0] + sh_ref[0] + r_ref[0].astype(jnp.float32)
    o_ref[0] = _lrelu(out, alpha).astype(o_ref.dtype)


def norm_residual_act(y3_cm, scale_cm, shift_cm, x_cm, *, alpha):
    N, C, S = y3_cm.shape
    bs = S if S <= _ROW_TILE else _ROW_TILE
    T = pl.cdiv(S, bs)
    return pl.pallas_call(
        functools.partial(_norm_res_act_kernel, alpha=alpha),
        out_shape=jax.ShapeDtypeStruct((N, C, S), x_cm.dtype),
        grid_spec=pltpu.PrefetchScalarGridSpec(
            num_scalar_prefetch=0,
            grid=(N, T),
            in_specs=[
                pl.BlockSpec((1, C, bs), lambda n, t: (n, 0, t)),
                pl.BlockSpec((1, C, 1), lambda n, t: (n, 0, 0)),
                pl.BlockSpec((1, C, 1), lambda n, t: (n, 0, 0)),
                pl.BlockSpec((1, C, bs), lambda n, t: (n, 0, t)),
            ],
            out_specs=pl.BlockSpec((1, C, bs), lambda n, t: (n, 0, t))),
        compiler_params=pltpu.CompilerParams(
            dimension_semantics=("parallel", "parallel"),
            vmem_limit_bytes=_VMEM_LIMIT),
    )(y3_cm, scale_cm, shift_cm, x_cm)


# ---------------------------------------------------------------------------
# InstanceNorm scale/shift from accumulated per-channel sum / sumsq (tiny).
# ---------------------------------------------------------------------------
def _affine_from_stats(stats_n2c, count):
    s1 = stats_n2c[:, 0, :]
    s2 = stats_n2c[:, 1, :]
    mean = s1 / count
    var = jnp.maximum(s2 / count - mean * mean, 0.0)
    inv = lax.rsqrt(var + EPS)
    return inv, -mean * inv                                  # each (N, C)


# ---------------------------------------------------------------------------
# Bottleneck forward (stride=1, downsample=None)
# ---------------------------------------------------------------------------
def bottleneck_forward(x_ncdhw, params, *, lrelu_alpha, act_dtype=jnp.bfloat16):
    N, Cin, D, H, W = x_ncdhw.shape
    S = D * H * W
    P = params["w1"].shape[1]          # planes
    Cexp = params["w3"].shape[1]       # planes * expansion
    assert Cexp == Cin, "identity residual requires in_planes == planes*expansion"

    x_cm = x_ncdhw.reshape(N, Cin, S)                        # channel-major view (free)

    # Stage 1: conv1 (1x1x1) + per-tile IN1 stats.
    y1, st1 = conv1_pointwise(x_cm, params["w1"], act_dtype=act_dtype)
    sc1, sh1 = _affine_from_stats(jnp.sum(st1, axis=1), S)

    # Stage 2: IN1 + LReLU fused into conv2 (3x3x3, rolling depth scratch).
    w2_flat = params["w2"].reshape(3, 9 * P, P)              # (kd, (kh,kw,cin), cout)
    y2, st2 = norm_act_conv3x3x3(y1.reshape(N, D, H, W, P),
                                 sc1[:, None, :], sh1[:, None, :], w2_flat,
                                 alpha=lrelu_alpha, act_dtype=act_dtype)
    sc2, sh2 = _affine_from_stats(st2, S)

    # Stage 3: IN2 + LReLU fused into conv3 (1x1x1), channel-major output.
    y3_cm, st3 = norm_act_conv1_cm(y2.reshape(N, S, P),
                                   sc2[:, None, :], sh2[:, None, :],
                                   params["w3"], alpha=lrelu_alpha,
                                   act_dtype=act_dtype)
    sc3, sh3 = _affine_from_stats(jnp.sum(st3, axis=1), S)

    # Stage 4: IN3 + residual add + LReLU -> output directly in NCDHW.
    out_cm = norm_residual_act(y3_cm, sc3[:, :, None], sh3[:, :, None], x_cm,
                               alpha=lrelu_alpha)
    return out_cm.reshape(N, Cexp, D, H, W)


# ---------------------------------------------------------------------------
# Pure-JAX reference (sanity check only)
# ---------------------------------------------------------------------------
def _reference(x, params, alpha):
    def inorm(y):
        m = jnp.mean(y, axis=(2, 3, 4), keepdims=True)
        v = jnp.mean((y - m) ** 2, axis=(2, 3, 4), keepdims=True)
        return (y - m) / jnp.sqrt(v + EPS)

    def lrelu(y):
        return jnp.where(y >= 0, y, alpha * y)

    dn = ("NCDHW", "OIDHW", "NCDHW")
    w1 = jnp.transpose(params["w1"], (1, 0))[:, :, None, None, None]
    w2 = jnp.transpose(params["w2"], (4, 3, 0, 1, 2))        # (O, I, kd, kh, kw)
    w3 = jnp.transpose(params["w3"], (1, 0))[:, :, None, None, None]

    out = lax.conv_general_dilated(x, w1, (1, 1, 1), "VALID", dimension_numbers=dn)
    out = lrelu(inorm(out))
    out = lax.conv_general_dilated(out, w2, (1, 1, 1),
                                   [(1, 1), (1, 1), (1, 1)], dimension_numbers=dn)
    out = lrelu(inorm(out))
    out = lax.conv_general_dilated(out, w3, (1, 1, 1), "VALID", dimension_numbers=dn)
    out = inorm(out) + x
    return lrelu(out)


if __name__ == "__main__":
    key = jax.random.PRNGKey(0)
    N, in_planes, planes = 2, 16, 4          # in_planes == planes * expansion (=4)
    D = H = W = 8
    lrelu_alpha = 0.1

    k1, k2, k3, kx = jax.random.split(key, 4)
    params = {
        "w1": jax.random.normal(k1, (in_planes, planes), jnp.float32) * 0.1,
        "w2": jax.random.normal(k2, (3, 3, 3, planes, planes), jnp.float32) * 0.1,
        "w3": jax.random.normal(k3, (planes, planes * 4), jnp.float32) * 0.1,
    }
    x = jax.random.normal(kx, (N, in_planes, D, H, W), jnp.float32)

    y = bottleneck_forward(x, params, lrelu_alpha=lrelu_alpha)
    jax.block_until_ready(y)

    y_ref = _reference(x, params, lrelu_alpha)
    assert y.shape == (N, in_planes, D, H, W)
    err = float(jnp.max(jnp.abs(y - y_ref)))
    # bf16 intermediate activations (f32 stats / f32 MXU accumulation) are the
    # dominant error source vs. the all-f32 reference.
    assert jnp.allclose(y, y_ref, atol=3e-2, rtol=3e-2), err
    print("KERNEL_OK")
</pallas_src>

<mosaic_0001>
module attributes {stable_mosaic.version = 11 : i64} {
  func.func @_conv1_cm_kernel(%arg0: i32, %arg1: i32, %arg2: memref<1x16x512xf32, #tpu.memory_space<vmem>>, %arg3: memref<16x4xf32, #tpu.memory_space<vmem>>, %arg4: memref<1x512x4xbf16, #tpu.memory_space<vmem>>, %arg5: memref<1x1x2x4xf32, #tpu.memory_space<vmem>>) attributes {dimension_semantics = [#tpu.dimension_semantics<parallel>, #tpu.dimension_semantics<parallel>], iteration_bounds = array<i64: 2, 1>, scalar_prefetch = 0 : i64, scratch_operands = 0 : i64, tpu.core_type = #tpu.core_type<tc>, window_params = [{transform_indices = @transform_0, window_bounds = array<i64: 1, 16, 512>}, {pipeline_mode = #tpu.pipeline_mode<synchronous>, transform_indices = @transform_1, window_bounds = array<i64: 16, 4>}, {transform_indices = @transform_2, window_bounds = array<i64: 1, 512, 4>}, {transform_indices = @transform_3, window_bounds = array<i64: 1, 1, 2, 4>}]} {
    %c0 = arith.constant 0 : index
    %c0_0 = arith.constant 0 : index
    %c0_1 = arith.constant 0 : index
    %0 = vector.load %arg2[%c0, %c0_0, %c0_1] : memref<1x16x512xf32, #tpu.memory_space<vmem>>, vector<1x16x512xf32>
    %1 = vector.shape_cast %0 : vector<1x16x512xf32> to vector<16x512xf32>
    %c0_2 = arith.constant 0 : index
    %c0_3 = arith.constant 0 : index
    %2 = vector.load %arg3[%c0_2, %c0_3] : memref<16x4xf32, #tpu.memory_space<vmem>>, vector<16x4xf32>
    %cst = arith.constant dense<0.000000e+00> : vector<512x4xf32>
    %3 = tpu.matmul %1, %2, %cst {dimension_numbers = #tpu.dot_dimension_numbers<[0], [0], [1], [1], [0, 1, 1, 1], [], []>} : vector<16x512xf32>, vector<16x4xf32>, vector<512x4xf32> -> vector<512x4xf32>
    %4 = arith.truncf %3 : vector<512x4xf32> to vector<512x4xbf16>
    %c0_4 = arith.constant 0 : index
    %c0_5 = arith.constant 0 : index
    %c0_6 = arith.constant 0 : index
    %5 = vector.load %arg4[%c0_4, %c0_5, %c0_6] : memref<1x512x4xbf16, #tpu.memory_space<vmem>>, vector<1x512x4xbf16>
    %6 = vector.shape_cast %5 : vector<1x512x4xbf16> to vector<512x4xbf16>
    %7 = vector.shape_cast %4 : vector<512x4xbf16> to vector<1x512x4xbf16>
    tpu.vector_store %arg4[%c0_4, %c0_5, %c0_6], %7 {strides = array<i32>} : memref<1x512x4xbf16, #tpu.memory_space<vmem>>, vector<1x512x4xbf16>,
    %cst_7 = arith.constant dense<0.000000e+00> : vector<4xf32>
    %8 = vector.multi_reduction <add>, %3, %cst_7 [0] : vector<512x4xf32> to vector<4xf32>
    %9 = vector.shape_cast %8 : vector<4xf32> to vector<1x4xf32>
    %c0_8 = arith.constant 0 : index
    %c0_9 = arith.constant 0 : index
    %c0_10 = arith.constant 0 : index
    %c0_11 = arith.constant 0 : index
    %10 = vector.load %arg5[%c0_8, %c0_9, %c0_10, %c0_11] : memref<1x1x2x4xf32, #tpu.memory_space<vmem>>, vector<1x1x1x4xf32>
    %11 = vector.shape_cast %10 : vector<1x1x1x4xf32> to vector<1x4xf32>
    %12 = vector.shape_cast %9 : vector<1x4xf32> to vector<1x1x1x4xf32>
    tpu.vector_store %arg5[%c0_8, %c0_9, %c0_10, %c0_11], %12 {strides = array<i32>} : memref<1x1x2x4xf32, #tpu.memory_space<vmem>>, vector<1x1x1x4xf32>,
    %13 = arith.mulf %3, %3 : vector<512x4xf32>
    %cst_12 = arith.constant dense<0.000000e+00> : vector<4xf32>
    %14 = vector.multi_reduction <add>, %13, %cst_12 [0] : vector<512x4xf32> to vector<4xf32>
    %15 = vector.shape_cast %14 : vector<4xf32> to vector<1x4xf32>
    %c0_13 = arith.constant 0 : index
    %c0_14 = arith.constant 0 : index
    %c1 = arith.constant 1 : index
    %c0_15 = arith.constant 0 : index
    %16 = vector.load %arg5[%c0_13, %c0_14, %c1, %c0_15] : memref<1x1x2x4xf32, #tpu.memory_space<vmem>>, vector<1x1x1x4xf32>
    %17 = vector.shape_cast %16 : vector<1x1x1x4xf32> to vector<1x4xf32>
    %18 = vector.shape_cast %15 : vector<1x4xf32> to vector<1x1x1x4xf32>
    tpu.vector_store %arg5[%c0_13, %c0_14, %c1, %c0_15], %18 {strides = array<i32>} : memref<1x1x2x4xf32, #tpu.memory_space<vmem>>, vector<1x1x1x4xf32>,
    return
  }
  func.func @transform_0(%arg0: i32, %arg1: i32) -> (i32, i32, i32) {
    %c0_i32 = arith.constant 0 : i32
    %c0_i32_0 = arith.constant 0 : i32
    return %arg0, %c0_i32, %arg1 : i32, i32, i32
  }
  func.func @transform_1(%arg0: i32, %arg1: i32) -> (i32, i32) {
    %c0_i32 = arith.constant 0 : i32
    %c0_i32_0 = arith.constant 0 : i32
    %c0_i32_1 = arith.constant 0 : i32
    return %c0_i32, %c0_i32_0 : i32, i32
  }
  func.func @transform_2(%arg0: i32, %arg1: i32) -> (i32, i32, i32) {
    %c0_i32 = arith.constant 0 : i32
    %c0_i32_0 = arith.constant 0 : i32
    return %arg0, %arg1, %c0_i32 : i32, i32, i32
  }
  func.func @transform_3(%arg0: i32, %arg1: i32) -> (i32, i32, i32, i32) {
    %c0_i32 = arith.constant 0 : i32
    %c0_i32_0 = arith.constant 0 : i32
    %c0_i32_1 = arith.constant 0 : i32
    return %arg0, %arg1, %c0_i32, %c0_i32_0 : i32, i32, i32, i32
  }
}

</mosaic_0001>

<llo_original>
// kernel: tpu_custom_call.1
$region0: #{tpu_custom_call.1}
  #allocation0 [shape = 'u32[]', space=smem, size = 0x4, offset = 0x4, fixed_abs, tag = 'smem constant byte address 0x4 - core index']
  #allocation1 [shape = 'u32[144,128]{1,0:T(1,128)}', space=vmem, size = 0x12000, scoped, tag = 'internal scratch']
  %s0 = inlined_call_operand.hbm [shape: f32[2,16,512], index: 0, kind: input, shape index: {}]
  %s1 = inlined_call_operand.vmem [shape: f32[16,4], index: 1, kind: input, shape index: {}]
  %s2 = inlined_call_operand.vmem [shape: bf16[2,512,4], index: 2, kind: output, shape index: {0}]
  %s3 = inlined_call_operand.hbm [shape: f32[2,1,2,4], index: 3, kind: output, shape index: {1}]
  %4 = xla_tuple %s2, %s3
  %s5 = sld [smem:[#allocation0]]
  $region53: #{tpu_custom_call.1} parent=0
    _
  %s7 = ssub.s32 1, %s5
  %s8 = scalar_select 0, %s7, %s5
  $region1: #{tpu_custom_call.1} parent=0
    #allocation2 [shape = 'u8[65536]{0}', space=vmem, size = 0x10000, scoped, tag = 'input window, operand 0']
    #allocation3 [shape = 's32[2]{0}', space=sflag, size = 0x8, scoped, tag = 'scoped memory for tpu_custom_call.1']
    #allocation4 [shape = 's32[2]{0}', space=sflag, size = 0x8, scoped, tag = 'scoped memory for tpu_custom_call.1']
    #allocation5 [shape = 'u8[2048]{0}', space=vmem, size = 0x800, scoped, tag = 'output window, operand 1']
    %9 = vsyncpa [#allocation3], 0
    %s10 = scalar_lea.sflag [#allocation3], 1
    %11 = vsyncpa %s10, 0
    %12 = vsyncpa [#allocation4], 0
    %s13 = scalar_lea.sflag [#allocation4], 1
    %14 = vsyncpa %s13, 0
    loop: start=0, step=1, limit=4
    $region2: #{tpu_custom_call.1} parent=1 // loop_pre_header
      _
    $region3: #{tpu_custom_call.1} parent=1 // loop_header
      %s16 = sphi 0, %s20
      %p17 = scmp.ge.s32.totalorder %s16, 4
      %s23 = sphi 0, %s35
      %s24 = sphi 0, %s31
      %s25 = sphi 0, %s23
      %s26 = sphi 0, %s24
      %s27 = sphi 0, %s25
      %s28 = sphi 0, %s26
      %s40 = sphi 0, %s42
      %s43 = sphi 0, %s40
      %s44 = sphi 0, %s43
      %s60 = sphi 0, %s44
      %s64 = sphi 0, %s64
      %s66 = sphi 0, %s64
      %s67 = sphi 0, %s66
      %s81 = sphi 0, %s67
      %s89 = sphi 0, %s91
      %s92 = sphi 0, %s89
      %s93 = sphi 0, %s92
      %s109 = sphi 0, %s93
      %s117 = sphi 0, %s119
      %s120 = sphi 0, %s117
      %s121 = sphi 0, %s120
      %s137 = sphi 0, %s121
    $region4: #{tpu_custom_call.1} parent=1 // loop_header_branch
      %19 = sbr.rel (%p17) target = $region8
    $region5: #{tpu_custom_call.1} parent=1 // loop_body
      %s21 = ssub.s32 %s16, 1
      %s22 = ssub.s32 %s16, 2
      %s29 = sadd.s32 1, %s24
      %p30 = scmp.ge.s32.totalorder %s29, 1
      %s31 = scalar_select %p30, 0, %s29
      %s32 = sadd.s32 1, %s23
      %s33 = scalar_select %p30, %s32, %s23
      %p34 = scmp.ge.s32.totalorder %s33, 2
      %s35 = scalar_select %p34, 0, %s33
      %s36 = ssub.s32 %s23, %s35
      %s37 = ssub.s32 %s24, %s31
      %s38 = sor.u32 %s36, %s37
      %p39 = scmp.eq.s32.totalorder %s38, 0
      %s41 = sadd.s32 %s40, 1
      %s42 = scalar_select %p39, %s40, %s41
      %p45 = pneg %p39
      %p46 = scmp.eq.s32.totalorder %s16, 1
      %p47 = por %p45, %p46
      %p48 = scmp.ne.s32.totalorder %s40, %s43
      %p49 = scmp.eq.s32.totalorder %s16, 0
      %p50 = por %p48, %p49
      %p51 = scmp.ne.s32.totalorder %s40, %s43
      %p52 = scmp.eq.s32.totalorder %s21, 1
      %p53 = por %p51, %p52
      %p54 = scmp.ne.s32.totalorder %s43, %s44
      %p55 = scmp.eq.s32.totalorder %s21, 0
      %p56 = por %p54, %p55
      %p57 = scmp.ne.s32.totalorder %s43, %s44
      %p58 = scmp.eq.s32.totalorder %s22, 1
      %p59 = por %p57, %p58
      %p61 = scmp.ne.s32.totalorder %s44, %s60
      %p62 = scmp.eq.s32.totalorder %s22, 0
      %p63 = por %p61, %p62
      %s65 = sadd.s32 %s64, 1
      %p68 = scmp.eq.s32.totalorder %s16, 1
      %p69 = scmp.ne.s32.totalorder %s64, %s66
      %p70 = scmp.eq.s32.totalorder %s16, 0
      %p71 = por %p69, %p70
      %p72 = scmp.ne.s32.totalorder %s64, %s66
      %p73 = scmp.eq.s32.totalorder %s21, 1
      %p74 = por %p72, %p73
      %p75 = scmp.ne.s32.totalorder %s66, %s67
      %p76 = scmp.eq.s32.totalorder %s21, 0
      %p77 = por %p75, %p76
      %p78 = scmp.ne.s32.totalorder %s66, %s67
      %p79 = scmp.eq.s32.totalorder %s22, 1
      %p80 = por %p78, %p79
      %p82 = scmp.ne.s32.totalorder %s67, %s81
      %p83 = scmp.eq.s32.totalorder %s22, 0
      %p84 = por %p82, %p83
      %s85 = ssub.s32 %s23, %s35
      %s86 = ssub.s32 %s24, %s31
      %s87 = sor.u32 %s85, %s86
      %p88 = scmp.eq.s32.totalorder %s87, 0
      %s90 = sadd.s32 %s89, 1
      %s91 = scalar_select %p88, %s89, %s90
      %p94 = pneg %p88
      %p95 = scmp.eq.s32.totalorder %s16, 1
      %p96 = por %p94, %p95
      %p97 = scmp.ne.s32.totalorder %s89, %s92
      %p98 = scmp.eq.s32.totalorder %s16, 0
      %p99 = por %p97, %p98
      %p100 = scmp.ne.s32.totalorder %s89, %s92
      %p101 = scmp.eq.s32.totalorder %s21, 1
      %p102 = por %p100, %p101
      %p103 = scmp.ne.s32.totalorder %s92, %s93
      %p104 = scmp.eq.s32.totalorder %s21, 0
      %p105 = por %p103, %p104
      %p106 = scmp.ne.s32.totalorder %s92, %s93
      %p107 = scmp.eq.s32.totalorder %s22, 1
      %p108 = por %p106, %p107
      %p110 = scmp.ne.s32.totalorder %s93, %s109
      %p111 = scmp.eq.s32.totalorder %s22, 0
      %p112 = por %p110, %p111
      %s113 = ssub.s32 %s23, %s35
      %s114 = ssub.s32 %s24, %s31
      %s115 = sor.u32 %s113, %s114
      %p116 = scmp.eq.s32.totalorder %s115, 0
      %s118 = sadd.s32 %s117, 1
      %s119 = scalar_select %p116, %s117, %s118
      %p122 = pneg %p116
      %p123 = scmp.eq.s32.totalorder %s16, 1
      %p124 = por %p122, %p123
      %p125 = scmp.ne.s32.totalorder %s117, %s120
      %p126 = scmp.eq.s32.totalorder %s16, 0
      %p127 = por %p125, %p126
      %p128 = scmp.ne.s32.totalorder %s117, %s120
      %p129 = scmp.eq.s32.totalorder %s21, 1
      %p130 = por %p128, %p129
      %p131 = scmp.ne.s32.totalorder %s120, %s121
      %p132 = scmp.eq.s32.totalorder %s21, 0
      %p133 = por %p131, %p132
      %p134 = scmp.ne.s32.totalorder %s120, %s121
      %p135 = scmp.eq.s32.totalorder %s22, 1
      %p136 = por %p134, %p135
      %p138 = scmp.ne.s32.totalorder %s121, %s137
      %p139 = scmp.eq.s32.totalorder %s22, 0
      %p140 = por %p138, %p139
      %p141 = scmp.le.s32.totalorder 1, %s16
      %p142 = scmp.lt.s32.totalorder %s16, 3
      %p143 = pnand %p141, %p142
      %p144 = pneg %p143
      // Predicated region
      $region9: #{tpu_custom_call.1} parent=5 // pred_check
        _
      $region10: #{tpu_custom_call.1} parent=5 // pred_check_branch
        %146 = sbr.rel (%p143) target = $region12
      $region11: #{tpu_custom_call.1} parent=5 // pred_region
        %s147 = ssub.s32 %s16, 1
        // Predicated region
        $region13: #{tpu_custom_call.1} parent=11 // pred_check
          %p148 = pneg %p77
        $region14: #{tpu_custom_call.1} parent=11 // pred_check_branch
          %150 = sbr.rel (%p148) target = $region16
        $region15: #{tpu_custom_call.1} parent=11 // pred_region
          _
        $region16: #{tpu_custom_call.1} parent=11 // pred_fallthru
          _
      $region12: #{tpu_custom_call.1} parent=5 // pred_fallthru
        _
      %p151 = scmp.lt.s32.totalorder %s16, 2
      // Predicated region
      $region17: #{tpu_custom_call.1} parent=5 // pred_check
        %p152 = pneg %p151
      $region18: #{tpu_custom_call.1} parent=5 // pred_check_branch
        %154 = sbr.rel (%p152) target = $region20
      $region19: #{tpu_custom_call.1} parent=5 // pred_region
        // Predicated region
        $region21: #{tpu_custom_call.1} parent=19 // pred_check
          %p155 = pneg %p50
        $region22: #{tpu_custom_call.1} parent=19 // pred_check_branch
          %157 = sbr.rel (%p155) target = $region24
        $region23: #{tpu_custom_call.1} parent=19 // pred_region
          %s158 = sand.u32 %s40, 1
          %s159 = scalar_lea.sflag [#allocation3], %s158
          %s160 = sand.u32 %s40, 1
          %s161 = smul.addr %s160, 64
          %s162 = scalar_lea.vmem [#allocation2], %s161
          %s163 = smul.u32 4, %s24
          %s165 = ssub.s32 1024, 1024
          %166 = vsyncadd %s159, %s165
          %s167 = smul.addr %s23, 8
          %s168 = sadd.s32 %s163, %s167
          %s169 = smul.addr %s168, 128
          %s170 = scalar_lea.hbm %s0, %s169
          %s171 = sshll.u32 %s162, 4
          %s172 = int_to_ptr.vmem [resolvable:$true] %s171
          %177 = dma.hbm_to_vmem [thread:$0]  %s170, 1024, %s172, %s159, 512, 512, 32
        $region24: #{tpu_custom_call.1} parent=19 // pred_fallthru
          _
      $region20: #{tpu_custom_call.1} parent=5 // pred_fallthru
        _
      %p178 = scmp.le.s32.totalorder 1, %s16
      %p179 = scmp.lt.s32.totalorder %s16, 3
      %p180 = pnand %p178, %p179
      %p181 = pneg %p180
      // Predicated region
      $region25: #{tpu_custom_call.1} parent=5 // pred_check
        _
      $region26: #{tpu_custom_call.1} parent=5 // pred_check_branch
        %183 = sbr.rel (%p180) target = $region28
      $region27: #{tpu_custom_call.1} parent=5 // pred_region
        %s184 = ssub.s32 %s16, 1
        %s185 = sand.u32 %s43, 1
        %s186 = scalar_lea.sflag [#allocation3], %s185
        %s187 = sand.u32 %s43, 1
        %s188 = smul.addr %s187, 64
        %s189 = scalar_lea.vmem [#allocation2], %s188
        // Predicated region
        $region29: #{tpu_custom_call.1} parent=27 // pred_check
          %p190 = pneg %p56
        $region30: #{tpu_custom_call.1} parent=27 // pred_check_branch
          %192 = sbr.rel (%p190) target = $region32
        $region31: #{tpu_custom_call.1} parent=27 // pred_region
          %193 = dma.done %s186, 1024
        $region32: #{tpu_custom_call.1} parent=27 // pred_fallthru
          _
        %s194 = sand.u32 %s43, 1
        %s195 = scalar_lea.sflag [#allocation3], %s194
        %s196 = sand.u32 %s43, 1
        %s197 = smul.addr %s196, 64
        %s198 = scalar_lea.vmem [#allocation2], %s197
        %p199 = pneg %p56
        %p200 = pneg %p53
        %p201 = pneg %p77
        %p202 = pneg %p74
        %p203 = pneg %p105
        %p204 = pneg %p102
        %s205 = smul.u32 64, %s26
        %p206 = scmp.lt.s32.totalorder %s25, 1
        %s207 = scalar_select %p206, %s25, 1
        %p208 = scmp.lt.s32.totalorder %s205, 63
        %s209 = scalar_select %p208, %s205, 63
        %s210 = smul.addr %s207, 64
        %s211 = sadd.s32 %s209, %s210
        %s212 = smul.addr %s211, 4
        %s213 = scalar_lea.vmem %s2, %s212
        %p214 = pneg %p133
        %p215 = pneg %p130
        %s216 = sand.u32 %s120, 1
        %s217 = scalar_lea.sflag [#allocation4], %s216
        %s218 = sand.u32 %s120, 1
        %s219 = smul.addr %s218, 2
        %s220 = scalar_lea.vmem [#allocation5], %s219
        %s221 = smul.u32 4, %s26
        %s222 = smul.u32 64, %s26
        %p223 = scmp.lt.s32.totalorder %s25, 1
        %s224 = scalar_select %p223, %s25, 1
        %p225 = scmp.lt.s32.totalorder %s222, 63
        %s226 = scalar_select %p225, %s222, 63
        %s227 = smul.addr %s224, 64
        %s228 = sadd.s32 %s226, %s227
        %s229 = smul.addr %s228, 4
        %s230 = scalar_lea.vmem %s2, %s229
        %s231 = smul.u32 64, %s26
        %v232 = vld [vmem:[%s189] sm:$0xff]
        %v233 = vld [vmem:[%s189 + $0x8] sm:$0xff]
        %v234 = vld [vmem:[%s189 + $0x10] sm:$0xff]
        %v235 = vld [vmem:[%s189 + $0x18] sm:$0xff]
        %v236 = vld [vmem:[%s189 + $0x20] sm:$0xff]
        %v237 = vld [vmem:[%s189 + $0x28] sm:$0xff]
        %v238 = vld [vmem:[%s189 + $0x30] sm:$0xff]
        %v239 = vld [vmem:[%s189 + $0x38] sm:$0xff]
        %v240 = vld [vmem:[%s1] sm:$0xff]
        %v241 = vld [vmem:[%s1 + $0x8] sm:$0xff]
        %242 = vxpose.xlu0.b32.start [1/16] %v232, 128
        %243 = vxpose.xlu0.b32.cont [2/16] %v236, 128
        %244 = vxpose.xlu0.b32.cont [3/16] 0.0, 128
        %245 = vxpose.xlu0.b32.cont [4/16] 0.0, 128
        %246 = vxpose.xlu0.b32.cont [5/16] 0.0, 128
        %247 = vxpose.xlu0.b32.cont [6/16] 0.0, 128
        %248 = vxpose.xlu0.b32.cont [7/16] 0.0, 128
        %249 = vxpose.xlu0.b32.cont [8/16] 0.0, 128
        %250 = vxpose.xlu0.b32.cont [9/16] 0.0, 128
        %251 = vxpose.xlu0.b32.cont [10/16] 0.0, 128
        %252 = vxpose.xlu0.b32.cont [11/16] 0.0, 128
        %253 = vxpose.xlu0.b32.cont [12/16] 0.0, 128
        %254 = vxpose.xlu0.b32.cont [13/16] 0.0, 128
        %255 = vxpose.xlu0.b32.cont [14/16] 0.0, 128
        %256 = vxpose.xlu0.b32.cont [15/16] 0.0, 128
        %257 = vxpose.xlu0.b32.end [16/16] 0.0, 128
        %v258 = vpop.trf.xlu0
        %v259 = vpop.trf.xlu0
        %v260 = vpop.trf.xlu0
        %v261 = vpop.trf.xlu0
        %v262 = vpop.trf.xlu0
        %v263 = vpop.trf.xlu0
        %v264 = vpop.trf.xlu0
        %v265 = vpop.trf.xlu0
        %v266 = vpop.trf.xlu0
        %v267 = vpop.trf.xlu0
        %v268 = vpop.trf.xlu0
        %v269 = vpop.trf.xlu0
        %v270 = vpop.trf.xlu0
        %v271 = vpop.trf.xlu0
        %v272 = vpop.trf.xlu0
        %v273 = vpop.trf.xlu0
        %274 = vxpose.xlu0.b32.start [1/16] %v233, 128
        %275 = vxpose.xlu0.b32.cont [2/16] %v237, 128
        %276 = vxpose.xlu0.b32.cont [3/16] 0.0, 128
        %277 = vxpose.xlu0.b32.cont [4/16] 0.0, 128
        %278 = vxpose.xlu0.b32.cont [5/16] 0.0, 128
        %279 = vxpose.xlu0.b32.cont [6/16] 0.0, 128
        %280 = vxpose.xlu0.b32.cont [7/16] 0.0, 128
        %281 = vxpose.xlu0.b32.cont [8/16] 0.0, 128
        %282 = vxpose.xlu0.b32.cont [9/16] 0.0, 128
        %283 = vxpose.xlu0.b32.cont [10/16] 0.0, 128
        %284 = vxpose.xlu0.b32.cont [11/16] 0.0, 128
        %285 = vxpose.xlu0.b32.cont [12/16] 0.0, 128
        %286 = vxpose.xlu0.b32.cont [13/16] 0.0, 128
        %287 = vxpose.xlu0.b32.cont [14/16] 0.0, 128
        %288 = vxpose.xlu0.b32.cont [15/16] 0.0, 128
        %289 = vxpose.xlu0.b32.end [16/16] 0.0, 128
        %v290 = vpop.trf.xlu0
        %v291 = vpop.trf.xlu0
        %v292 = vpop.trf.xlu0
        %v293 = vpop.trf.xlu0
        %v294 = vpop.trf.xlu0
        %v295 = vpop.trf.xlu0
        %v296 = vpop.trf.xlu0
        %v297 = vpop.trf.xlu0
        %v298 = vpop.trf.xlu0
        %v299 = vpop.trf.xlu0
        %v300 = vpop.trf.xlu0
        %v301 = vpop.trf.xlu0
        %v302 = vpop.trf.xlu0
        %v303 = vpop.trf.xlu0
        %v304 = vpop.trf.xlu0
        %v305 = vpop.trf.xlu0
        %306 = vxpose.xlu0.b32.start [1/16] %v234, 128
        %307 = vxpose.xlu0.b32.cont [2/16] %v238, 128
        %308 = vxpose.xlu0.b32.cont [3/16] 0.0, 128
        %309 = vxpose.xlu0.b32.cont [4/16] 0.0, 128
        %310 = vxpose.xlu0.b32.cont [5/16] 0.0, 128
        %311 = vxpose.xlu0.b32.cont [6/16] 0.0, 128
        %312 = vxpose.xlu0.b32.cont [7/16] 0.0, 128
        %313 = vxpose.xlu0.b32.cont [8/16] 0.0, 128
        %314 = vxpose.xlu0.b32.cont [9/16] 0.0, 128
        %315 = vxpose.xlu0.b32.cont [10/16] 0.0, 128
        %316 = vxpose.xlu0.b32.cont [11/16] 0.0, 128
        %317 = vxpose.xlu0.b32.cont [12/16] 0.0, 128
        %318 = vxpose.xlu0.b32.cont [13/16] 0.0, 128
        %319 = vxpose.xlu0.b32.cont [14/16] 0.0, 128
        %320 = vxpose.xlu0.b32.cont [15/16] 0.0, 128
        %321 = vxpose.xlu0.b32.end [16/16] 0.0, 128
        %v322 = vpop.trf.xlu0
        %v323 = vpop.trf.xlu0
        %v324 = vpop.trf.xlu0
        %v325 = vpop.trf.xlu0
        %v326 = vpop.trf.xlu0
        %v327 = vpop.trf.xlu0
        %v328 = vpop.trf.xlu0
        %v329 = vpop.trf.xlu0
        %v330 = vpop.trf.xlu0
        %v331 = vpop.trf.xlu0
        %v332 = vpop.trf.xlu0
        %v333 = vpop.trf.xlu0
        %v334 = vpop.trf.xlu0
        %v335 = vpop.trf.xlu0
        %v336 = vpop.trf.xlu0
        %v337 = vpop.trf.xlu0
        %338 = vxpose.xlu0.b32.start [1/16] %v235, 128
        %339 = vxpose.xlu0.b32.cont [2/16] %v239, 128
        %340 = vxpose.xlu0.b32.cont [3/16] 0.0, 128
        %341 = vxpose.xlu0.b32.cont [4/16] 0.0, 128
        %342 = vxpose.xlu0.b32.cont [5/16] 0.0, 128
        %343 = vxpose.xlu0.b32.cont [6/16] 0.0, 128
        %344 = vxpose.xlu0.b32.cont [7/16] 0.0, 128
        %345 = vxpose.xlu0.b32.cont [8/16] 0.0, 128
        %346 = vxpose.xlu0.b32.cont [9/16] 0.0, 128
        %347 = vxpose.xlu0.b32.cont [10/16] 0.0, 128
        %348 = vxpose.xlu0.b32.cont [11/16] 0.0, 128
        %349 = vxpose.xlu0.b32.cont [12/16] 0.0, 128
        %350 = vxpose.xlu0.b32.cont [13/16] 0.0, 128
        %351 = vxpose.xlu0.b32.cont [14/16] 0.0, 128
        %352 = vxpose.xlu0.b32.cont [15/16] 0.0, 128
        %353 = vxpose.xlu0.b32.end [16/16] 0.0, 128
        %v354 = vpop.trf.xlu0
        %v355 = vpop.trf.xlu0
        %v356 = vpop.trf.xlu0
        %v357 = vpop.trf.xlu0
        %v358 = vpop.trf.xlu0
        %v359 = vpop.trf.xlu0
        %v360 = vpop.trf.xlu0
        %v361 = vpop.trf.xlu0
        %v362 = vpop.trf.xlu0
        %v363 = vpop.trf.xlu0
        %v364 = vpop.trf.xlu0
        %v365 = vpop.trf.xlu0
        %v366 = vpop.trf.xlu0
        %v367 = vpop.trf.xlu0
        %v368 = vpop.trf.xlu0
        %v369 = vpop.trf.xlu0
        %vm370 = vcmask 130048
        %v372 = vsel %vm370, %v258, 0
        %v375 = vsel %vm370, %v259, 0
        %v378 = vsel %vm370, %v260, 0
        %v381 = vsel %vm370, %v261, 0
        %v384 = vsel %vm370, %v262, 0
        %v387 = vsel %vm370, %v263, 0
        %v390 = vsel %vm370, %v264, 0
        %v393 = vsel %vm370, %v265, 0
        %v396 = vsel %vm370, %v266, 0
        %v399 = vsel %vm370, %v267, 0
        %v402 = vsel %vm370, %v268, 0
        %v405 = vsel %vm370, %v269, 0
        %v408 = vsel %vm370, %v270, 0
        %v411 = vsel %vm370, %v271, 0
        %v414 = vsel %vm370, %v272, 0
        %v417 = vsel %vm370, %v273, 0
        %v420 = vsel %vm370, %v290, 0
        %v423 = vsel %vm370, %v291, 0
        %v426 = vsel %vm370, %v292, 0
        %v429 = vsel %vm370, %v293, 0
        %v432 = vsel %vm370, %v294, 0
        %v435 = vsel %vm370, %v295, 0
        %v438 = vsel %vm370, %v296, 0
        %v441 = vsel %vm370, %v297, 0
        %v444 = vsel %vm370, %v298, 0
        %v447 = vsel %vm370, %v299, 0
        %v450 = vsel %vm370, %v300, 0
        %v453 = vsel %vm370, %v301, 0
        %v456 = vsel %vm370, %v302, 0
        %v459 = vsel %vm370, %v303, 0
        %v462 = vsel %vm370, %v304, 0
        %v465 = vsel %vm370, %v305, 0
        %v468 = vsel %vm370, %v322, 0
        %v471 = vsel %vm370, %v323, 0
        %v474 = vsel %vm370, %v324, 0
        %v477 = vsel %vm370, %v325, 0
        %v480 = vsel %vm370, %v326, 0
        %v483 = vsel %vm370, %v327, 0
        %v486 = vsel %vm370, %v328, 0
        %v489 = vsel %vm370, %v329, 0
        %v492 = vsel %vm370, %v330, 0
        %v495 = vsel %vm370, %v331, 0
        %v498 = vsel %vm370, %v332, 0
        %v501 = vsel %vm370, %v333, 0
        %v504 = vsel %vm370, %v334, 0
        %v507 = vsel %vm370, %v335, 0
        %v510 = vsel %vm370, %v336, 0
        %v513 = vsel %vm370, %v337, 0
        %v516 = vsel %vm370, %v354, 0
        %v519 = vsel %vm370, %v355, 0
        %v522 = vsel %vm370, %v356, 0
        %v525 = vsel %vm370, %v357, 0
        %v528 = vsel %vm370, %v358, 0
        %v531 = vsel %vm370, %v359, 0
        %v534 = vsel %vm370, %v360, 0
        %v537 = vsel %vm370, %v361, 0
        %v540 = vsel %vm370, %v362, 0
        %v543 = vsel %vm370, %v363, 0
        %v546 = vsel %vm370, %v364, 0
        %v549 = vsel %vm370, %v365, 0
        %v552 = vsel %vm370, %v366, 0
        %v555 = vsel %vm370, %v367, 0
        %v558 = vsel %vm370, %v368, 0
        %v561 = vsel %vm370, %v369, 0
        %563 = vmatprep.subr.mxu0 0.0
        %564 = vmatpush1.msra.mxu0 %v240
        %565 = vmatprep.subr.mxu0 0.0
        %566 = vmatpush1.msra.mxu0 %v241
        %567 = vmatprep.subr.mxu0 0.0
        %568 = vmatpush1.msra.mxu0 0.0
        %569 = vmatprep.subr.mxu0 0.0
        %570 = vmatpush1.msra.mxu0 0.0
        %571 = vmatprep.subr.mxu0 0.0
        %572 = vmatpush1.msra.mxu0 0.0
        %573 = vmatprep.subr.mxu0 0.0
        %574 = vmatpush1.msra.mxu0 0.0
        %575 = vmatprep.subr.mxu0 0.0
        %576 = vmatpush1.msra.mxu0 0.0
        %577 = vmatprep.subr.mxu0 0.0
        %578 = vmatpush1.msra.mxu0 0.0
        %579 = vmatprep.subr.mxu0 0.0
        %580 = vmatpush1.msra.mxu0 0.0
        %581 = vmatprep.subr.mxu0 0.0
        %582 = vmatpush1.msra.mxu0 0.0
        %583 = vmatprep.subr.mxu0 0.0
        %584 = vmatpush1.msra.mxu0 0.0
        %585 = vmatprep.subr.mxu0 0.0
        %586 = vmatpush1.msra.mxu0 0.0
        %587 = vmatprep.subr.mxu0 0.0
        %588 = vmatpush1.msra.mxu0 0.0
        %589 = vmatprep.subr.mxu0 0.0
        %590 = vmatpush1.msra.mxu0 0.0
        %591 = vmatprep.subr.mxu0 0.0
        %592 = vmatpush1.msra.mxu0 0.0
        %593 = vmatprep.subr.mxu0 0.0
        %594 = vmatpush1.msra.mxu0 0.0
        %595 = vmatprep.subr.mxu0 0.0
        %596 = vmatpush1.msra.mxu0 0.0
        %597 = vmatprep.subr.mxu0 0.0
        %598 = vmatpush1.msra.mxu0 0.0
        %599 = vmatprep.subr.mxu0 0.0
        %600 = vmatpush1.msra.mxu0 0.0
        %601 = vmatprep.subr.mxu0 0.0
        %602 = vmatpush1.msra.mxu0 0.0
        %603 = vmatprep.subr.mxu0 0.0
        %604 = vmatpush1.msra.mxu0 0.0
        %605 = vmatprep.subr.mxu0 0.0
        %606 = vmatpush1.msra.mxu0 0.0
        %607 = vmatprep.subr.mxu0 0.0
        %608 = vmatpush1.msra.mxu0 0.0
        %609 = vmatprep.subr.mxu0 0.0
        %610 = vmatpush1.msra.mxu0 0.0
        %611 = vmatprep.subr.mxu0 0.0
        %612 = vmatpush1.msra.mxu0 0.0
        %613 = vmatprep.subr.mxu0 0.0
        %614 = vmatpush1.msra.mxu0 0.0
        %615 = vmatprep.subr.mxu0 0.0
        %616 = vmatpush1.msra.mxu0 0.0
        %617 = vmatprep.subr.mxu0 0.0
        %618 = vmatpush1.msra.mxu0 0.0
        %619 = vmatprep.subr.mxu0 0.0
        %620 = vmatpush1.msra.mxu0 0.0
        %621 = vmatprep.subr.mxu0 0.0
        %622 = vmatpush1.msra.mxu0 0.0
        %623 = vmatprep.subr.mxu0 0.0
        %624 = vmatpush1.msra.mxu0 0.0
        %625 = vmatprep.subr.mxu0 0.0
        %626 = vmatpush1.msra.mxu0 0.0
        %627 = vmatprep.mubr.f32.mxu0 0.0
        %628 = vmatmul.mubr.f32.gmra.mrb[0].mxu0 %v372
        %v629 = vpop.f32.mrb[0].mxu0
        %v630 = vadd.f32 0.0, %v629
        %v631 = vpop.f32.mrb[0].mxu0
        %632 = vmatprep.mubr.f32.mxu0 0.0
        %633 = vmatmul.mubr.f32.gmra.mrb[0].mxu0 %v375
        %v634 = vpop.f32.mrb[0].mxu0
        %v635 = vadd.f32 0.0, %v634
        %v636 = vpop.f32.mrb[0].mxu0
        %637 = vmatprep.mubr.f32.mxu0 0.0
        %638 = vmatmul.mubr.f32.gmra.mrb[0].mxu0 %v378
        %v639 = vpop.f32.mrb[0].mxu0
        %v640 = vadd.f32 0.0, %v639
        %v641 = vpop.f32.mrb[0].mxu0
        %642 = vmatprep.mubr.f32.mxu0 0.0
        %643 = vmatmul.mubr.f32.gmra.mrb[0].mxu0 %v381
        %v644 = vpop.f32.mrb[0].mxu0
        %v645 = vadd.f32 0.0, %v644
        %v646 = vpop.f32.mrb[0].mxu0
        %647 = vmatprep.mubr.f32.mxu0 0.0
        %648 = vmatmul.mubr.f32.gmra.mrb[0].mxu0 %v384
        %v649 = vpop.f32.mrb[0].mxu0
        %v650 = vadd.f32 0.0, %v649
        %v651 = vpop.f32.mrb[0].mxu0
        %652 = vmatprep.mubr.f32.mxu0 0.0
        %653 = vmatmul.mubr.f32.gmra.mrb[0].mxu0 %v387
        %v654 = vpop.f32.mrb[0].mxu0
        %v655 = vadd.f32 0.0, %v654
        %v656 = vpop.f32.mrb[0].mxu0
        %657 = vmatprep.mubr.f32.mxu0 0.0
        %658 = vmatmul.mubr.f32.gmra.mrb[0].mxu0 %v390
        %v659 = vpop.f32.mrb[0].mxu0
        %v660 = vadd.f32 0.0, %v659
        %v661 = vpop.f32.mrb[0].mxu0
        %662 = vmatprep.mubr.f32.mxu0 0.0
        %663 = vmatmul.mubr.f32.gmra.mrb[0].mxu0 %v393
        %v664 = vpop.f32.mrb[0].mxu0
        %v665 = vadd.f32 0.0, %v664
        %v666 = vpop.f32.mrb[0].mxu0
        %667 = vmatprep.mubr.f32.mxu0 0.0
        %668 = vmatmul.mubr.f32.gmra.mrb[0].mxu0 %v396
        %v669 = vpop.f32.mrb[0].mxu0
        %v670 = vadd.f32 0.0, %v669
        %v671 = vpop.f32.mrb[0].mxu0
        %672 = vmatprep.mubr.f32.mxu0 0.0
        %673 = vmatmul.mubr.f32.gmra.mrb[0].mxu0 %v399
        %v674 = vpop.f32.mrb[0].mxu0
        %v675 = vadd.f32 0.0, %v674
        %v676 = vpop.f32.mrb[0].mxu0
        %677 = vmatprep.mubr.f32.mxu0 0.0
        %678 = vmatmul.mubr.f32.gmra.mrb[0].mxu0 %v402
        %v679 = vpop.f32.mrb[0].mxu0
        %v680 = vadd.f32 0.0, %v679
        %v681 = vpop.f32.mrb[0].mxu0
        %682 = vmatprep.mubr.f32.mxu0 0.0
        %683 = vmatmul.mubr.f32.gmra.mrb[0].mxu0 %v405
        %v684 = vpop.f32.mrb[0].mxu0
        %v685 = vadd.f32 0.0, %v684
        %v686 = vpop.f32.mrb[0].mxu0
        %687 = vmatprep.mubr.f32.mxu0 0.0
        %688 = vmatmul.mubr.f32.gmra.mrb[0].mxu0 %v408
        %v689 = vpop.f32.mrb[0].mxu0
        %v690 = vadd.f32 0.0, %v689
        %v691 = vpop.f32.mrb[0].mxu0
        %692 = vmatprep.mubr.f32.mxu0 0.0
        %693 = vmatmul.mubr.f32.gmra.mrb[0].mxu0 %v411
        %v694 = vpop.f32.mrb[0].mxu0
        %v695 = vadd.f32 0.0, %v694
        %v696 = vpop.f32.mrb[0].mxu0
        %697 = vmatprep.mubr.f32.mxu0 0.0
        %698 = vmatmul.mubr.f32.gmra.mrb[0].mxu0 %v414
        %v699 = vpop.f32.mrb[0].mxu0
        %v700 = vadd.f32 0.0, %v699
        %v701 = vpop.f32.mrb[0].mxu0
        %702 = vmatprep.mubr.f32.mxu0 0.0
        %703 = vmatmul.mubr.f32.gmra.mrb[0].mxu0 %v417
        %v704 = vpop.f32.mrb[0].mxu0
        %v705 = vadd.f32 0.0, %v704
        %v706 = vpop.f32.mrb[0].mxu0
        %707 = vmatprep.mubr.f32.mxu0 0.0
        %708 = vmatmul.mubr.f32.gmra.mrb[0].mxu0 %v420
        %v709 = vpop.f32.mrb[0].mxu0
        %v710 = vadd.f32 0.0, %v709
        %v711 = vpop.f32.mrb[0].mxu0
        %712 = vmatprep.mubr.f32.mxu0 0.0
        %713 = vmatmul.mubr.f32.gmra.mrb[0].mxu0 %v423
        %v714 = vpop.f32.mrb[0].mxu0
        %v715 = vadd.f32 0.0, %v714
        %v716 = vpop.f32.mrb[0].mxu0
        %717 = vmatprep.mubr.f32.mxu0 0.0
        %718 = vmatmul.mubr.f32.gmra.mrb[0].mxu0 %v426
        %v719 = vpop.f32.mrb[0].mxu0
        %v720 = vadd.f32 0.0, %v719
        %v721 = vpop.f32.mrb[0].mxu0
        %722 = vmatprep.mubr.f32.mxu0 0.0
        %723 = vmatmul.mubr.f32.gmra.mrb[0].mxu0 %v429
        %v724 = vpop.f32.mrb[0].mxu0
        %v725 = vadd.f32 0.0, %v724
        %v726 = vpop.f32.mrb[0].mxu0
        %727 = vmatprep.mubr.f32.mxu0 0.0
        %728 = vmatmul.mubr.f32.gmra.mrb[0].mxu0 %v432
        %v729 = vpop.f32.mrb[0].mxu0
        %v730 = vadd.f32 0.0, %v729
        %v731 = vpop.f32.mrb[0].mxu0
        %732 = vmatprep.mubr.f32.mxu0 0.0
        %733 = vmatmul.mubr.f32.gmra.mrb[0].mxu0 %v435
        %v734 = vpop.f32.mrb[0].mxu0
        %v735 = vadd.f32 0.0, %v734
        %v736 = vpop.f32.mrb[0].mxu0
        %737 = vmatprep.mubr.f32.mxu0 0.0
        %738 = vmatmul.mubr.f32.gmra.mrb[0].mxu0 %v438
        %v739 = vpop.f32.mrb[0].mxu0
        %v740 = vadd.f32 0.0, %v739
        %v741 = vpop.f32.mrb[0].mxu0
        %742 = vmatprep.mubr.f32.mxu0 0.0
        %743 = vmatmul.mubr.f32.gmra.mrb[0].mxu0 %v441
        %v744 = vpop.f32.mrb[0].mxu0
        %v745 = vadd.f32 0.0, %v744
        %v746 = vpop.f32.mrb[0].mxu0
        %747 = vmatprep.mubr.f32.mxu0 0.0
        %748 = vmatmul.mubr.f32.gmra.mrb[0].mxu0 %v444
        %v749 = vpop.f32.mrb[0].mxu0
        %v750 = vadd.f32 0.0, %v749
        %v751 = vpop.f32.mrb[0].mxu0
        %752 = vmatprep.mubr.f32.mxu0 0.0
        %753 = vmatmul.mubr.f32.gmra.mrb[0].mxu0 %v447
        %v754 = vpop.f32.mrb[0].mxu0
        %v755 = vadd.f32 0.0, %v754
        %v756 = vpop.f32.mrb[0].mxu0
        %757 = vmatprep.mubr.f32.mxu0 0.0
        %758 = vmatmul.mubr.f32.gmra.mrb[0].mxu0 %v450
        %v759 = vpop.f32.mrb[0].mxu0
        %v760 = vadd.f32 0.0, %v759
        %v761 = vpop.f32.mrb[0].mxu0
        %762 = vmatprep.mubr.f32.mxu0 0.0
        %763 = vmatmul.mubr.f32.gmra.mrb[0].mxu0 %v453
        %v764 = vpop.f32.mrb[0].mxu0
        %v765 = vadd.f32 0.0, %v764
        %v766 = vpop.f32.mrb[0].mxu0
        %767 = vmatprep.mubr.f32.mxu0 0.0
        %768 = vmatmul.mubr.f32.gmra.mrb[0].mxu0 %v456
        %v769 = vpop.f32.mrb[0].mxu0
        %v770 = vadd.f32 0.0, %v769
        %v771 = vpop.f32.mrb[0].mxu0
        %772 = vmatprep.mubr.f32.mxu0 0.0
        %773 = vmatmul.mubr.f32.gmra.mrb[0].mxu0 %v459
        %v774 = vpop.f32.mrb[0].mxu0
        %v775 = vadd.f32 0.0, %v774
        %v776 = vpop.f32.mrb[0].mxu0
        %777 = vmatprep.mubr.f32.mxu0 0.0
        %778 = vmatmul.mubr.f32.gmra.mrb[0].mxu0 %v462
        %v779 = vpop.f32.mrb[0].mxu0
        %v780 = vadd.f32 0.0, %v779
        %v781 = vpop.f32.mrb[0].mxu0
        %782 = vmatprep.mubr.f32.mxu0 0.0
        %783 = vmatmul.mubr.f32.gmra.mrb[0].mxu0 %v465
        %v784 = vpop.f32.mrb[0].mxu0
        %v785 = vadd.f32 0.0, %v784
        %v786 = vpop.f32.mrb[0].mxu0
        %787 = vmatprep.mubr.f32.mxu0 0.0
        %788 = vmatmul.mubr.f32.gmra.mrb[0].mxu0 %v468
        %v789 = vpop.f32.mrb[0].mxu0
        %v790 = vadd.f32 0.0, %v789
        %v791 = vpop.f32.mrb[0].mxu0
        %792 = vmatprep.mubr.f32.mxu0 0.0
        %793 = vmatmul.mubr.f32.gmra.mrb[0].mxu0 %v471
        %v794 = vpop.f32.mrb[0].mxu0
        %v795 = vadd.f32 0.0, %v794
        %v796 = vpop.f32.mrb[0].mxu0
        %797 = vmatprep.mubr.f32.mxu0 0.0
        %798 = vmatmul.mubr.f32.gmra.mrb[0].mxu0 %v474
        %v799 = vpop.f32.mrb[0].mxu0
        %v800 = vadd.f32 0.0, %v799
        %v801 = vpop.f32.mrb[0].mxu0
        %802 = vmatprep.mubr.f32.mxu0 0.0
        %803 = vmatmul.mubr.f32.gmra.mrb[0].mxu0 %v477
        %v804 = vpop.f32.mrb[0].mxu0
        %v805 = vadd.f32 0.0, %v804
        %v806 = vpop.f32.mrb[0].mxu0
        %807 = vmatprep.mubr.f32.mxu0 0.0
        %808 = vmatmul.mubr.f32.gmra.mrb[0].mxu0 %v480
        %v809 = vpop.f32.mrb[0].mxu0
        %v810 = vadd.f32 0.0, %v809
        %v811 = vpop.f32.mrb[0].mxu0
        %812 = vmatprep.mubr.f32.mxu0 0.0
        %813 = vmatmul.mubr.f32.gmra.mrb[0].mxu0 %v483
        %v814 = vpop.f32.mrb[0].mxu0
        %v815 = vadd.f32 0.0, %v814
        %v816 = vpop.f32.mrb[0].mxu0
        %817 = vmatprep.mubr.f32.mxu0 0.0
        %818 = vmatmul.mubr.f32.gmra.mrb[0].mxu0 %v486
        %v819 = vpop.f32.mrb[0].mxu0
        %v820 = vadd.f32 0.0, %v819
        %v821 = vpop.f32.mrb[0].mxu0
        %822 = vmatprep.mubr.f32.mxu0 0.0
        %823 = vmatmul.mubr.f32.gmra.mrb[0].mxu0 %v489
        %v824 = vpop.f32.mrb[0].mxu0
        %v825 = vadd.f32 0.0, %v824
        %v826 = vpop.f32.mrb[0].mxu0
        %827 = vmatprep.mubr.f32.mxu0 0.0
        %828 = vmatmul.mubr.f32.gmra.mrb[0].mxu0 %v492
        %v829 = vpop.f32.mrb[0].mxu0
        %v830 = vadd.f32 0.0, %v829
        %v831 = vpop.f32.mrb[0].mxu0
        %832 = vmatprep.mubr.f32.mxu0 0.0
        %833 = vmatmul.mubr.f32.gmra.mrb[0].mxu0 %v495
        %v834 = vpop.f32.mrb[0].mxu0
        %v835 = vadd.f32 0.0, %v834
        %v836 = vpop.f32.mrb[0].mxu0
        %837 = vmatprep.mubr.f32.mxu0 0.0
        %838 = vmatmul.mubr.f32.gmra.mrb[0].mxu0 %v498
        %v839 = vpop.f32.mrb[0].mxu0
        %v840 = vadd.f32 0.0, %v839
        %v841 = vpop.f32.mrb[0].mxu0
        %842 = vmatprep.mubr.f32.mxu0 0.0
        %843 = vmatmul.mubr.f32.gmra.mrb[0].mxu0 %v501
        %v844 = vpop.f32.mrb[0].mxu0
        %v845 = vadd.f32 0.0, %v844
        %v846 = vpop.f32.mrb[0].mxu0
        %847 = vmatprep.mubr.f32.mxu0 0.0
        %848 = vmatmul.mubr.f32.gmra.mrb[0].mxu0 %v504
        %v849 = vpop.f32.mrb[0].mxu0
        %v850 = vadd.f32 0.0, %v849
        %v851 = vpop.f32.mrb[0].mxu0
        %852 = vmatprep.mubr.f32.mxu0 0.0
        %853 = vmatmul.mubr.f32.gmra.mrb[0].mxu0 %v507
        %v854 = vpop.f32.mrb[0].mxu0
        %v855 = vadd.f32 0.0, %v854
        %v856 = vpop.f32.mrb[0].mxu0
        %857 = vmatprep.mubr.f32.mxu0 0.0
        %858 = vmatmul.mubr.f32.gmra.mrb[0].mxu0 %v510
        %v859 = vpop.f32.mrb[0].mxu0
        %v860 = vadd.f32 0.0, %v859
        %v861 = vpop.f32.mrb[0].mxu0
        %862 = vmatprep.mubr.f32.mxu0 0.0
        %863 = vmatmul.mubr.f32.gmra.mrb[0].mxu0 %v513
        %v864 = vpop.f32.mrb[0].mxu0
        %v865 = vadd.f32 0.0, %v864
        %v866 = vpop.f32.mrb[0].mxu0
        %867 = vmatprep.mubr.f32.mxu0 0.0
        %868 = vmatmul.mubr.f32.gmra.mrb[0].mxu0 %v516
        %v869 = vpop.f32.mrb[0].mxu0
        %v870 = vadd.f32 0.0, %v869
        %v871 = vpop.f32.mrb[0].mxu0
        %872 = vmatprep.mubr.f32.mxu0 0.0
        %873 = vmatmul.mubr.f32.gmra.mrb[0].mxu0 %v519
        %v874 = vpop.f32.mrb[0].mxu0
        %v875 = vadd.f32 0.0, %v874
        %v876 = vpop.f32.mrb[0].mxu0
        %877 = vmatprep.mubr.f32.mxu0 0.0
        %878 = vmatmul.mubr.f32.gmra.mrb[0].mxu0 %v522
        %v879 = vpop.f32.mrb[0].mxu0
        %v880 = vadd.f32 0.0, %v879
        %v881 = vpop.f32.mrb[0].mxu0
        %882 = vmatprep.mubr.f32.mxu0 0.0
        %883 = vmatmul.mubr.f32.gmra.mrb[0].mxu0 %v525
        %v884 = vpop.f32.mrb[0].mxu0
        %v885 = vadd.f32 0.0, %v884
        %v886 = vpop.f32.mrb[0].mxu0
        %887 = vmatprep.mubr.f32.mxu0 0.0
        %888 = vmatmul.mubr.f32.gmra.mrb[0].mxu0 %v528
        %v889 = vpop.f32.mrb[0].mxu0
        %v890 = vadd.f32 0.0, %v889
        %v891 = vpop.f32.mrb[0].mxu0
        %892 = vmatprep.mubr.f32.mxu0 0.0
        %893 = vmatmul.mubr.f32.gmra.mrb[0].mxu0 %v531
        %v894 = vpop.f32.mrb[0].mxu0
        %v895 = vadd.f32 0.0, %v894
        %v896 = vpop.f32.mrb[0].mxu0
        %897 = vmatprep.mubr.f32.mxu0 0.0
        %898 = vmatmul.mubr.f32.gmra.mrb[0].mxu0 %v534
        %v899 = vpop.f32.mrb[0].mxu0
        %v900 = vadd.f32 0.0, %v899
        %v901 = vpop.f32.mrb[0].mxu0
        %902 = vmatprep.mubr.f32.mxu0 0.0
        %903 = vmatmul.mubr.f32.gmra.mrb[0].mxu0 %v537
        %v904 = vpop.f32.mrb[0].mxu0
        %v905 = vadd.f32 0.0, %v904
        %v906 = vpop.f32.mrb[0].mxu0
        %907 = vmatprep.mubr.f32.mxu0 0.0
        %908 = vmatmul.mubr.f32.gmra.mrb[0].mxu0 %v540
        %v909 = vpop.f32.mrb[0].mxu0
        %v910 = vadd.f32 0.0, %v909
        %v911 = vpop.f32.mrb[0].mxu0
        %912 = vmatprep.mubr.f32.mxu0 0.0
        %913 = vmatmul.mubr.f32.gmra.mrb[0].mxu0 %v543
        %v914 = vpop.f32.mrb[0].mxu0
        %v915 = vadd.f32 0.0, %v914
        %v916 = vpop.f32.mrb[0].mxu0
        %917 = vmatprep.mubr.f32.mxu0 0.0
        %918 = vmatmul.mubr.f32.gmra.mrb[0].mxu0 %v546
        %v919 = vpop.f32.mrb[0].mxu0
        %v920 = vadd.f32 0.0, %v919
        %v921 = vpop.f32.mrb[0].mxu0
        %922 = vmatprep.mubr.f32.mxu0 0.0
        %923 = vmatmul.mubr.f32.gmra.mrb[0].mxu0 %v549
        %v924 = vpop.f32.mrb[0].mxu0
        %v925 = vadd.f32 0.0, %v924
        %v926 = vpop.f32.mrb[0].mxu0
        %927 = vmatprep.mubr.f32.mxu0 0.0
        %928 = vmatmul.mubr.f32.gmra.mrb[0].mxu0 %v552
        %v929 = vpop.f32.mrb[0].mxu0
        %v930 = vadd.f32 0.0, %v929
        %v931 = vpop.f32.mrb[0].mxu0
        %932 = vmatprep.mubr.f32.mxu0 0.0
        %933 = vmatmul.mubr.f32.gmra.mrb[0].mxu0 %v555
        %v934 = vpop.f32.mrb[0].mxu0
        %v935 = vadd.f32 0.0, %v934
        %v936 = vpop.f32.mrb[0].mxu0
        %937 = vmatprep.mubr.f32.mxu0 0.0
        %938 = vmatmul.mubr.f32.gmra.mrb[0].mxu0 %v558
        %v939 = vpop.f32.mrb[0].mxu0
        %v940 = vadd.f32 0.0, %v939
        %v941 = vpop.f32.mrb[0].mxu0
        %942 = vmatprep.mubr.f32.mxu0 0.0
        %943 = vmatmul.mubr.f32.gmra.mrb[0].mxu0 %v561
        %v944 = vpop.f32.mrb[0].mxu0
        %v945 = vadd.f32 0.0, %v944
        %v946 = vpop.f32.mrb[0].mxu0
        %947 = vdwg.mxu0
        %v948 = vpack.c.bf16 %v635, %v630
        %v949 = vpack.c.bf16 %v645, %v640
        %v950 = vpack.c.bf16 %v655, %v650
        %v951 = vpack.c.bf16 %v665, %v660
        %v952 = vpack.c.bf16 %v675, %v670
        %v953 = vpack.c.bf16 %v685, %v680
        %v954 = vpack.c.bf16 %v695, %v690
        %v955 = vpack.c.bf16 %v705, %v700
        %v956 = vpack.c.bf16 %v715, %v710
        %v957 = vpack.c.bf16 %v725, %v720
        %v958 = vpack.c.bf16 %v735, %v730
        %v959 = vpack.c.bf16 %v745, %v740
        %v960 = vpack.c.bf16 %v755, %v750
        %v961 = vpack.c.bf16 %v765, %v760
        %v962 = vpack.c.bf16 %v775, %v770
        %v963 = vpack.c.bf16 %v785, %v780
        %v964 = vpack.c.bf16 %v795, %v790
        %v965 = vpack.c.bf16 %v805, %v800
        %v966 = vpack.c.bf16 %v815, %v810
        %v967 = vpack.c.bf16 %v825, %v820
        %v968 = vpack.c.bf16 %v835, %v830
        %v969 = vpack.c.bf16 %v845, %v840
        %v970 = vpack.c.bf16 %v855, %v850
        %v971 = vpack.c.bf16 %v865, %v860
        %v972 = vpack.c.bf16 %v875, %v870
        %v973 = vpack.c.bf16 %v885, %v880
        %v974 = vpack.c.bf16 %v895, %v890
        %v975 = vpack.c.bf16 %v905, %v900
        %v976 = vpack.c.bf16 %v915, %v910
        %v977 = vpack.c.bf16 %v925, %v920
        %v978 = vpack.c.bf16 %v935, %v930
        %v979 = vpack.c.bf16 %v945, %v940
        %v1012 = vunpack.c.l.b16 %v948
        %v1013 = vunpack.c.h.b16 %v948
        %v1014 = vunpack.c.l.b16 %v949
        %v1015 = vunpack.c.h.b16 %v949
        %v1016 = vunpack.c.l.b16 %v950
        %v1017 = vunpack.c.h.b16 %v950
        %v1018 = vunpack.c.l.b16 %v951
        %v1019 = vunpack.c.h.b16 %v951
        %v1020 = vunpack.c.l.b16 %v952
        %v1021 = vunpack.c.h.b16 %v952
        %v1022 = vunpack.c.l.b16 %v953
        %v1023 = vunpack.c.h.b16 %v953
        %v1024 = vunpack.c.l.b16 %v954
        %v1025 = vunpack.c.h.b16 %v954
        %v1026 = vunpack.c.l.b16 %v955
        %v1027 = vunpack.c.h.b16 %v955
        %v1028 = vunpack.c.l.b16 %v956
        %v1029 = vunpack.c.h.b16 %v956
        %v1030 = vunpack.c.l.b16 %v957
        %v1031 = vunpack.c.h.b16 %v957
        %v1032 = vunpack.c.l.b16 %v958
        %v1033 = vunpack.c.h.b16 %v958
        %v1034 = vunpack.c.l.b16 %v959
        %v1035 = vunpack.c.h.b16 %v959
        %v1036 = vunpack.c.l.b16 %v960
        %v1037 = vunpack.c.h.b16 %v960
        %v1038 = vunpack.c.l.b16 %v961
        %v1039 = vunpack.c.h.b16 %v961
        %v1040 = vunpack.c.l.b16 %v962
        %v1041 = vunpack.c.h.b16 %v962
        %v1042 = vunpack.c.l.b16 %v963
        %v1043 = vunpack.c.h.b16 %v963
        %v1044 = vunpack.c.l.b16 %v964
        %v1045 = vunpack.c.h.b16 %v964
        %v1046 = vunpack.c.l.b16 %v965
        %v1047 = vunpack.c.h.b16 %v965
        %v1048 = vunpack.c.l.b16 %v966
        %v1049 = vunpack.c.h.b16 %v966
        %v1050 = vunpack.c.l.b16 %v967
        %v1051 = vunpack.c.h.b16 %v967
        %v1052 = vunpack.c.l.b16 %v968
        %v1053 = vunpack.c.h.b16 %v968
        %v1054 = vunpack.c.l.b16 %v969
        %v1055 = vunpack.c.h.b16 %v969
        %v1056 = vunpack.c.l.b16 %v970
        %v1057 = vunpack.c.h.b16 %v970
        %v1058 = vunpack.c.l.b16 %v971
        %v1059 = vunpack.c.h.b16 %v971
        %v1060 = vunpack.c.l.b16 %v972
        %v1061 = vunpack.c.h.b16 %v972
        %v1062 = vunpack.c.l.b16 %v973
        %v1063 = vunpack.c.h.b16 %v973
        %v1064 = vunpack.c.l.b16 %v974
        %v1065 = vunpack.c.h.b16 %v974
        %v1066 = vunpack.c.l.b16 %v975
        %v1067 = vunpack.c.h.b16 %v975
        %v1068 = vunpack.c.l.b16 %v976
        %v1069 = vunpack.c.h.b16 %v976
        %v1070 = vunpack.c.l.b16 %v977
        %v1071 = vunpack.c.h.b16 %v977
        %v1072 = vunpack.c.l.b16 %v978
        %v1073 = vunpack.c.h.b16 %v978
        %v1074 = vunpack.c.l.b16 %v979
        %v1075 = vunpack.c.h.b16 %v979
        %v1076 = vpack.c.b16 %v1012, %v1012
        %v1077 = vpack.c.b16 %v1013, %v1013
        %v1078 = vpack.c.b16 %v1014, %v1014
        %v1079 = vpack.c.b16 %v1015, %v1015
        %v1080 = vpack.c.b16 %v1016, %v1016
        %v1081 = vpack.c.b16 %v1017, %v1017
        %v1082 = vpack.c.b16 %v1018, %v1018
        %v1083 = vpack.c.b16 %v1019, %v1019
        %v1084 = vpack.c.b16 %v1020, %v1020
        %v1085 = vpack.c.b16 %v1021, %v1021
        %v1086 = vpack.c.b16 %v1022, %v1022
        %v1087 = vpack.c.b16 %v1023, %v1023
        %v1088 = vpack.c.b16 %v1024, %v1024
        %v1089 = vpack.c.b16 %v1025, %v1025
        %v1090 = vpack.c.b16 %v1026, %v1026
        %v1091 = vpack.c.b16 %v1027, %v1027
        %v1092 = vpack.c.b16 %v1028, %v1028
        %v1093 = vpack.c.b16 %v1029, %v1029
        %v1094 = vpack.c.b16 %v1030, %v1030
        %v1095 = vpack.c.b16 %v1031, %v1031
        %v1096 = vpack.c.b16 %v1032, %v1032
        %v1097 = vpack.c.b16 %v1033, %v1033
        %v1098 = vpack.c.b16 %v1034, %v1034
        %v1099 = vpack.c.b16 %v1035, %v1035
        %v1100 = vpack.c.b16 %v1036, %v1036
        %v1101 = vpack.c.b16 %v1037, %v1037
        %v1102 = vpack.c.b16 %v1038, %v1038
        %v1103 = vpack.c.b16 %v1039, %v1039
        %v1104 = vpack.c.b16 %v1040, %v1040
        %v1105 = vpack.c.b16 %v1041, %v1041
        %v1106 = vpack.c.b16 %v1042, %v1042
        %v1107 = vpack.c.b16 %v1043, %v1043
        %v1108 = vpack.c.b16 %v1044, %v1044
        %v1109 = vpack.c.b16 %v1045, %v1045
        %v1110 = vpack.c.b16 %v1046, %v1046
        %v1111 = vpack.c.b16 %v1047, %v1047
        %v1112 = vpack.c.b16 %v1048, %v1048
        %v1113 = vpack.c.b16 %v1049, %v1049
        %v1114 = vpack.c.b16 %v1050, %v1050
        %v1115 = vpack.c.b16 %v1051, %v1051
        %v1116 = vpack.c.b16 %v1052, %v1052
        %v1117 = vpack.c.b16 %v1053, %v1053
        %v1118 = vpack.c.b16 %v1054, %v1054
        %v1119 = vpack.c.b16 %v1055, %v1055
        %v1120 = vpack.c.b16 %v1056, %v1056
        %v1121 = vpack.c.b16 %v1057, %v1057
        %v1122 = vpack.c.b16 %v1058, %v1058
        %v1123 = vpack.c.b16 %v1059, %v1059
        %v1124 = vpack.c.b16 %v1060, %v1060
        %v1125 = vpack.c.b16 %v1061, %v1061
        %v1126 = vpack.c.b16 %v1062, %v1062
        %v1127 = vpack.c.b16 %v1063, %v1063
        %v1128 = vpack.c.b16 %v1064, %v1064
        %v1129 = vpack.c.b16 %v1065, %v1065
        %v1130 = vpack.c.b16 %v1066, %v1066
        %v1131 = vpack.c.b16 %v1067, %v1067
        %v1132 = vpack.c.b16 %v1068, %v1068
        %v1133 = vpack.c.b16 %v1069, %v1069
        %v1134 = vpack.c.b16 %v1070, %v1070
        %v1135 = vpack.c.b16 %v1071, %v1071
        %v1136 = vpack.c.b16 %v1072, %v1072
        %v1137 = vpack.c.b16 %v1073, %v1073
        %v1138 = vpack.c.b16 %v1074, %v1074
        %v1139 = vpack.c.b16 %v1075, %v1075
        %vm1204 = vcmask 27648
        %1205 = vst.msk [vmem:[%s230] sm:$0xf] %vm1204, %v1076
        %1206 = vst.msk [vmem:[%s230 + $0x4] sm:$0xf] %vm1204, %v1077
        %1207 = vst.msk [vmem:[%s230 + $0x8] sm:$0xf] %vm1204, %v1078
        %1208 = vst.msk [vmem:[%s230 + $0xc] sm:$0xf] %vm1204, %v1079
        %1209 = vst.msk [vmem:[%s230 + $0x10] sm:$0xf] %vm1204, %v1080
        %1210 = vst.msk [vmem:[%s230 + $0x14] sm:$0xf] %vm1204, %v1081
        %1211 = vst.msk [vmem:[%s230 + $0x18] sm:$0xf] %vm1204, %v1082
        %1212 = vst.msk [vmem:[%s230 + $0x1c] sm:$0xf] %vm1204, %v1083
        %1213 = vst.msk [vmem:[%s230 + $0x20] sm:$0xf] %vm1204, %v1084
        %1214 = vst.msk [vmem:[%s230 + $0x24] sm:$0xf] %vm1204, %v1085
        %1215 = vst.msk [vmem:[%s230 + $0x28] sm:$0xf] %vm1204, %v1086
        %1216 = vst.msk [vmem:[%s230 + $0x2c] sm:$0xf] %vm1204, %v1087
        %1217 = vst.msk [vmem:[%s230 + $0x30] sm:$0xf] %vm1204, %v1088
        %1218 = vst.msk [vmem:[%s230 + $0x34] sm:$0xf] %vm1204, %v1089
        %1219 = vst.msk [vmem:[%s230 + $0x38] sm:$0xf] %vm1204, %v1090
        %1220 = vst.msk [vmem:[%s230 + $0x3c] sm:$0xf] %vm1204, %v1091
        %1221 = vst.msk [vmem:[%s230 + $0x40] sm:$0xf] %vm1204, %v1092
        %1222 = vst.msk [vmem:[%s230 + $0x44] sm:$0xf] %vm1204, %v1093
        %1223 = vst.msk [vmem:[%s230 + $0x48] sm:$0xf] %vm1204, %v1094
        %1224 = vst.msk [vmem:[%s230 + $0x4c] sm:$0xf] %vm1204, %v1095
        %1225 = vst.msk [vmem:[%s230 + $0x50] sm:$0xf] %vm1204, %v1096
        %1226 = vst.msk [vmem:[%s230 + $0x54] sm:$0xf] %vm1204, %v1097
        %1227 = vst.msk [vmem:[%s230 + $0x58] sm:$0xf] %vm1204, %v1098
        %1228 = vst.msk [vmem:[%s230 + $0x5c] sm:$0xf] %vm1204, %v1099
        %1229 = vst.msk [vmem:[%s230 + $0x60] sm:$0xf] %vm1204, %v1100
        %1230 = vst.msk [vmem:[%s230 + $0x64] sm:$0xf] %vm1204, %v1101
        %1231 = vst.msk [vmem:[%s230 + $0x68] sm:$0xf] %vm1204, %v1102
        %1232 = vst.msk [vmem:[%s230 + $0x6c] sm:$0xf] %vm1204, %v1103
        %1233 = vst.msk [vmem:[%s230 + $0x70] sm:$0xf] %vm1204, %v1104
        %1234 = vst.msk [vmem:[%s230 + $0x74] sm:$0xf] %vm1204, %v1105
        %1235 = vst.msk [vmem:[%s230 + $0x78] sm:$0xf] %vm1204, %v1106
        %1236 = vst.msk [vmem:[%s230 + $0x7c] sm:$0xf] %vm1204, %v1107
        %1237 = vst.msk [vmem:[%s230 + $0x80] sm:$0xf] %vm1204, %v1108
        %1238 = vst.msk [vmem:[%s230 + $0x84] sm:$0xf] %vm1204, %v1109
        %1239 = vst.msk [vmem:[%s230 + $0x88] sm:$0xf] %vm1204, %v1110
        %1240 = vst.msk [vmem:[%s230 + $0x8c] sm:$0xf] %vm1204, %v1111
        %1241 = vst.msk [vmem:[%s230 + $0x90] sm:$0xf] %vm1204, %v1112
        %1242 = vst.msk [vmem:[%s230 + $0x94] sm:$0xf] %vm1204, %v1113
        %1243 = vst.msk [vmem:[%s230 + $0x98] sm:$0xf] %vm1204, %v1114
        %1244 = vst.msk [vmem:[%s230 + $0x9c] sm:$0xf] %vm1204, %v1115
        %1245 = vst.msk [vmem:[%s230 + $0xa0] sm:$0xf] %vm1204, %v1116
        %1246 = vst.msk [vmem:[%s230 + $0xa4] sm:$0xf] %vm1204, %v1117
        %1247 = vst.msk [vmem:[%s230 + $0xa8] sm:$0xf] %vm1204, %v1118
        %1248 = vst.msk [vmem:[%s230 + $0xac] sm:$0xf] %vm1204, %v1119
        %1249 = vst.msk [vmem:[%s230 + $0xb0] sm:$0xf] %vm1204, %v1120
        %1250 = vst.msk [vmem:[%s230 + $0xb4] sm:$0xf] %vm1204, %v1121
        %1251 = vst.msk [vmem:[%s230 + $0xb8] sm:$0xf] %vm1204, %v1122
        %1252 = vst.msk [vmem:[%s230 + $0xbc] sm:$0xf] %vm1204, %v1123
        %1253 = vst.msk [vmem:[%s230 + $0xc0] sm:$0xf] %vm1204, %v1124
        %1254 = vst.msk [vmem:[%s230 + $0xc4] sm:$0xf] %vm1204, %v1125
        %1255 = vst.msk [vmem:[%s230 + $0xc8] sm:$0xf] %vm1204, %v1126
        %1256 = vst.msk [vmem:[%s230 + $0xcc] sm:$0xf] %vm1204, %v1127
        %1257 = vst.msk [vmem:[%s230 + $0xd0] sm:$0xf] %vm1204, %v1128
        %1258 = vst.msk [vmem:[%s230 + $0xd4] sm:$0xf] %vm1204, %v1129
        %1259 = vst.msk [vmem:[%s230 + $0xd8] sm:$0xf] %vm1204, %v1130
        %1260 = vst.msk [vmem:[%s230 + $0xdc] sm:$0xf] %vm1204, %v1131
        %1261 = vst.msk [vmem:[%s230 + $0xe0] sm:$0xf] %vm1204, %v1132
        %1262 = vst.msk [vmem:[%s230 + $0xe4] sm:$0xf] %vm1204, %v1133
        %1263 = vst.msk [vmem:[%s230 + $0xe8] sm:$0xf] %vm1204, %v1134
        %1264 = vst.msk [vmem:[%s230 + $0xec] sm:$0xf] %vm1204, %v1135
        %1265 = vst.msk [vmem:[%s230 + $0xf0] sm:$0xf] %vm1204, %v1136
        %1266 = vst.msk [vmem:[%s230 + $0xf4] sm:$0xf] %vm1204, %v1137
        %1267 = vst.msk [vmem:[%s230 + $0xf8] sm:$0xf] %vm1204, %v1138
        %1268 = vst.msk [vmem:[%s230 + $0xfc] sm:$0xf] %vm1204, %v1139
        %vm1269 = vcmask 31744
        %v1270 = vsel %vm1269, %v630, 0.0
        %v1271 = vsel %vm1269, %v635, 0.0
        %v1272 = vadd.f32 %v1270, %v1271
        %v1273 = vsel %vm1269, %v640, 0.0
        %v1274 = vadd.f32 %v1272, %v1273
        %v1275 = vsel %vm1269, %v645, 0.0
        %v1276 = vadd.f32 %v1274, %v1275
        %v1277 = vsel %vm1269, %v650, 0.0
        %v1278 = vadd.f32 %v1276, %v1277
        %v1279 = vsel %vm1269, %v655, 0.0
        %v1280 = vadd.f32 %v1278, %v1279
        %v1281 = vsel %vm1269, %v660, 0.0
        %v1282 = vadd.f32 %v1280, %v1281
        %v1283 = vsel %vm1269, %v665, 0.0
        %v1284 = vadd.f32 %v1282, %v1283
        %v1285 = vsel %vm1269, %v670, 0.0
        %v1286 = vadd.f32 %v1284, %v1285
        %v1287 = vsel %vm1269, %v675, 0.0
        %v1288 = vadd.f32 %v1286, %v1287
        %v1289 = vsel %vm1269, %v680, 0.0
        %v1290 = vadd.f32 %v1288, %v1289
        %v1291 = vsel %vm1269, %v685, 0.0
        %v1292 = vadd.f32 %v1290, %v1291
        %v1293 = vsel %vm1269, %v690, 0.0
        %v1294 = vadd.f32 %v1292, %v1293
        %v1295 = vsel %vm1269, %v695, 0.0
        %v1296 = vadd.f32 %v1294, %v1295
        %v1297 = vsel %vm1269, %v700, 0.0
        %v1298 = vadd.f32 %v1296, %v1297
        %v1299 = vsel %vm1269, %v705, 0.0
        %v1300 = vadd.f32 %v1298, %v1299
        %v1301 = vsel %vm1269, %v710, 0.0
        %v1302 = vadd.f32 %v1300, %v1301
        %v1303 = vsel %vm1269, %v715, 0.0
        %v1304 = vadd.f32 %v1302, %v1303
        %v1305 = vsel %vm1269, %v720, 0.0
        %v1306 = vadd.f32 %v1304, %v1305
        %v1307 = vsel %vm1269, %v725, 0.0
        %v1308 = vadd.f32 %v1306, %v1307
        %v1309 = vsel %vm1269, %v730, 0.0
        %v1310 = vadd.f32 %v1308, %v1309
        %v1311 = vsel %vm1269, %v735, 0.0
        %v1312 = vadd.f32 %v1310, %v1311
        %v1313 = vsel %vm1269, %v740, 0.0
        %v1314 = vadd.f32 %v1312, %v1313
        %v1315 = vsel %vm1269, %v745, 0.0
        %v1316 = vadd.f32 %v1314, %v1315
        %v1317 = vsel %vm1269, %v750, 0.0
        %v1318 = vadd.f32 %v1316, %v1317
        %v1319 = vsel %vm1269, %v755, 0.0
        %v1320 = vadd.f32 %v1318, %v1319
        %v1321 = vsel %vm1269, %v760, 0.0
        %v1322 = vadd.f32 %v1320, %v1321
        %v1323 = vsel %vm1269, %v765, 0.0
        %v1324 = vadd.f32 %v1322, %v1323
        %v1325 = vsel %vm1269, %v770, 0.0
        %v1326 = vadd.f32 %v1324, %v1325
        %v1327 = vsel %vm1269, %v775, 0.0
        %v1328 = vadd.f32 %v1326, %v1327
        %v1329 = vsel %vm1269, %v780, 0.0
        %v1330 = vadd.f32 %v1328, %v1329
        %v1331 = vsel %vm1269, %v785, 0.0
        %v1332 = vadd.f32 %v1330, %v1331
        %v1333 = vsel %vm1269, %v790, 0.0
        %v1334 = vadd.f32 %v1332, %v1333
        %v1335 = vsel %vm1269, %v795, 0.0
        %v1336 = vadd.f32 %v1334, %v1335
        %v1337 = vsel %vm1269, %v800, 0.0
        %v1338 = vadd.f32 %v1336, %v1337
        %v1339 = vsel %vm1269, %v805, 0.0
        %v1340 = vadd.f32 %v1338, %v1339
        %v1341 = vsel %vm1269, %v810, 0.0
        %v1342 = vadd.f32 %v1340, %v1341
        %v1343 = vsel %vm1269, %v815, 0.0
        %v1344 = vadd.f32 %v1342, %v1343
        %v1345 = vsel %vm1269, %v820, 0.0
        %v1346 = vadd.f32 %v1344, %v1345
        %v1347 = vsel %vm1269, %v825, 0.0
        %v1348 = vadd.f32 %v1346, %v1347
        %v1349 = vsel %vm1269, %v830, 0.0
        %v1350 = vadd.f32 %v1348, %v1349
        %v1351 = vsel %vm1269, %v835, 0.0
        %v1352 = vadd.f32 %v1350, %v1351
        %v1353 = vsel %vm1269, %v840, 0.0
        %v1354 = vadd.f32 %v1352, %v1353
        %v1355 = vsel %vm1269, %v845, 0.0
        %v1356 = vadd.f32 %v1354, %v1355
        %v1357 = vsel %vm1269, %v850, 0.0
        %v1358 = vadd.f32 %v1356, %v1357
        %v1359 = vsel %vm1269, %v855, 0.0
        %v1360 = vadd.f32 %v1358, %v1359
        %v1361 = vsel %vm1269, %v860, 0.0
        %v1362 = vadd.f32 %v1360, %v1361
        %v1363 = vsel %vm1269, %v865, 0.0
        %v1364 = vadd.f32 %v1362, %v1363
        %v1365 = vsel %vm1269, %v870, 0.0
        %v1366 = vadd.f32 %v1364, %v1365
        %v1367 = vsel %vm1269, %v875, 0.0
        %v1368 = vadd.f32 %v1366, %v1367
        %v1369 = vsel %vm1269, %v880, 0.0
        %v1370 = vadd.f32 %v1368, %v1369
        %v1371 = vsel %vm1269, %v885, 0.0
        %v1372 = vadd.f32 %v1370, %v1371
        %v1373 = vsel %vm1269, %v890, 0.0
        %v1374 = vadd.f32 %v1372, %v1373
        %v1375 = vsel %vm1269, %v895, 0.0
        %v1376 = vadd.f32 %v1374, %v1375
        %v1377 = vsel %vm1269, %v900, 0.0
        %v1378 = vadd.f32 %v1376, %v1377
        %v1379 = vsel %vm1269, %v905, 0.0
        %v1380 = vadd.f32 %v1378, %v1379
        %v1381 = vsel %vm1269, %v910, 0.0
        %v1382 = vadd.f32 %v1380, %v1381
        %v1383 = vsel %vm1269, %v915, 0.0
        %v1384 = vadd.f32 %v1382, %v1383
        %v1385 = vsel %vm1269, %v920, 0.0
        %v1386 = vadd.f32 %v1384, %v1385
        %v1387 = vsel %vm1269, %v925, 0.0
        %v1388 = vadd.f32 %v1386, %v1387
        %v1389 = vsel %vm1269, %v930, 0.0
        %v1390 = vadd.f32 %v1388, %v1389
        %v1391 = vsel %vm1269, %v935, 0.0
        %v1392 = vadd.f32 %v1390, %v1391
        %v1393 = vsel %vm1269, %v940, 0.0
        %v1394 = vadd.f32 %v1392, %v1393
        %v1395 = vsel %vm1269, %v945, 0.0
        %v1396 = vadd.f32 %v1394, %v1395
        %v1397 = vrot.slane %v1396, 4
        %v1398 = vadd.f32 %v1396, %v1397
        %v1399 = vrot.slane %v1398, 2
        %v1400 = vadd.f32 %v1398, %v1399
        %v1401 = vrot.slane %v1400, 1
        %v1402 = vadd.f32 %v1400, %v1401
        %vm1403 = vcmask 24576
        %1404 = vst.msk [vmem:[%s220] sm:$0x1] %vm1403, %v1402
        %v1405 = vmul.f32 %v630, %v630
        %v1406 = vmul.f32 %v635, %v635
        %v1407 = vmul.f32 %v640, %v640
        %v1408 = vmul.f32 %v645, %v645
        %v1409 = vmul.f32 %v650, %v650
        %v1410 = vmul.f32 %v655, %v655
        %v1411 = vmul.f32 %v660, %v660
        %v1412 = vmul.f32 %v665, %v665
        %v1413 = vmul.f32 %v670, %v670
        %v1414 = vmul.f32 %v675, %v675
        %v1415 = vmul.f32 %v680, %v680
        %v1416 = vmul.f32 %v685, %v685
        %v1417 = vmul.f32 %v690, %v690
        %v1418 = vmul.f32 %v695, %v695
        %v1419 = vmul.f32 %v700, %v700
        %v1420 = vmul.f32 %v705, %v705
        %v1421 = vmul.f32 %v710, %v710
        %v1422 = vmul.f32 %v715, %v715
        %v1423 = vmul.f32 %v720, %v720
        %v1424 = vmul.f32 %v725, %v725
        %v1425 = vmul.f32 %v730, %v730
        %v1426 = vmul.f32 %v735, %v735
        %v1427 = vmul.f32 %v740, %v740
        %v1428 = vmul.f32 %v745, %v745
        %v1429 = vmul.f32 %v750, %v750
        %v1430 = vmul.f32 %v755, %v755
        %v1431 = vmul.f32 %v760, %v760
        %v1432 = vmul.f32 %v765, %v765
        %v1433 = vmul.f32 %v770, %v770
        %v1434 = vmul.f32 %v775, %v775
        %v1435 = vmul.f32 %v780, %v780
        %v1436 = vmul.f32 %v785, %v785
        %v1437 = vmul.f32 %v790, %v790
        %v1438 = vmul.f32 %v795, %v795
        %v1439 = vmul.f32 %v800, %v800
        %v1440 = vmul.f32 %v805, %v805
        %v1441 = vmul.f32 %v810, %v810
        %v1442 = vmul.f32 %v815, %v815
        %v1443 = vmul.f32 %v820, %v820
        %v1444 = vmul.f32 %v825, %v825
        %v1445 = vmul.f32 %v830, %v830
        %v1446 = vmul.f32 %v835, %v835
        %v1447 = vmul.f32 %v840, %v840
        %v1448 = vmul.f32 %v845, %v845
        %v1449 = vmul.f32 %v850, %v850
        %v1450 = vmul.f32 %v855, %v855
        %v1451 = vmul.f32 %v860, %v860
        %v1452 = vmul.f32 %v865, %v865
        %v1453 = vmul.f32 %v870, %v870
        %v1454 = vmul.f32 %v875, %v875
        %v1455 = vmul.f32 %v880, %v880
        %v1456 = vmul.f32 %v885, %v885
        %v1457 = vmul.f32 %v890, %v890
        %v1458 = vmul.f32 %v895, %v895
        %v1459 = vmul.f32 %v900, %v900
        %v1460 = vmul.f32 %v905, %v905
        %v1461 = vmul.f32 %v910, %v910
        %v1462 = vmul.f32 %v915, %v915
        %v1463 = vmul.f32 %v920, %v920
        %v1464 = vmul.f32 %v925, %v925
        %v1465 = vmul.f32 %v930, %v930
        %v1466 = vmul.f32 %v935, %v935
        %v1467 = vmul.f32 %v940, %v940
        %v1468 = vmul.f32 %v945, %v945
        %v1469 = vsel %vm1269, %v1405, 0.0
        %v1470 = vsel %vm1269, %v1406, 0.0
        %v1471 = vadd.f32 %v1469, %v1470
        %v1472 = vsel %vm1269, %v1407, 0.0
        %v1473 = vadd.f32 %v1471, %v1472
        %v1474 = vsel %vm1269, %v1408, 0.0
        %v1475 = vadd.f32 %v1473, %v1474
        %v1476 = vsel %vm1269, %v1409, 0.0
        %v1477 = vadd.f32 %v1475, %v1476
        %v1478 = vsel %vm1269, %v1410, 0.0
        %v1479 = vadd.f32 %v1477, %v1478
        %v1480 = vsel %vm1269, %v1411, 0.0
        %v1481 = vadd.f32 %v1479, %v1480
        %v1482 = vsel %vm1269, %v1412, 0.0
        %v1483 = vadd.f32 %v1481, %v1482
        %v1484 = vsel %vm1269, %v1413, 0.0
        %v1485 = vadd.f32 %v1483, %v1484
        %v1486 = vsel %vm1269, %v1414, 0.0
        %v1487 = vadd.f32 %v1485, %v1486
        %v1488 = vsel %vm1269, %v1415, 0.0
        %v1489 = vadd.f32 %v1487, %v1488
        %v1490 = vsel %vm1269, %v1416, 0.0
        %v1491 = vadd.f32 %v1489, %v1490
        %v1492 = vsel %vm1269, %v1417, 0.0
        %v1493 = vadd.f32 %v1491, %v1492
        %v1494 = vsel %vm1269, %v1418, 0.0
        %v1495 = vadd.f32 %v1493, %v1494
        %v1496 = vsel %vm1269, %v1419, 0.0
        %v1497 = vadd.f32 %v1495, %v1496
        %v1498 = vsel %vm1269, %v1420, 0.0
        %v1499 = vadd.f32 %v1497, %v1498
        %v1500 = vsel %vm1269, %v1421, 0.0
        %v1501 = vadd.f32 %v1499, %v1500
        %v1502 = vsel %vm1269, %v1422, 0.0
        %v1503 = vadd.f32 %v1501, %v1502
        %v1504 = vsel %vm1269, %v1423, 0.0
        %v1505 = vadd.f32 %v1503, %v1504
        %v1506 = vsel %vm1269, %v1424, 0.0
        %v1507 = vadd.f32 %v1505, %v1506
        %v1508 = vsel %vm1269, %v1425, 0.0
        %v1509 = vadd.f32 %v1507, %v1508
        %v1510 = vsel %vm1269, %v1426, 0.0
        %v1511 = vadd.f32 %v1509, %v1510
        %v1512 = vsel %vm1269, %v1427, 0.0
        %v1513 = vadd.f32 %v1511, %v1512
        %v1514 = vsel %vm1269, %v1428, 0.0
        %v1515 = vadd.f32 %v1513, %v1514
        %v1516 = vsel %vm1269, %v1429, 0.0
        %v1517 = vadd.f32 %v1515, %v1516
        %v1518 = vsel %vm1269, %v1430, 0.0
        %v1519 = vadd.f32 %v1517, %v1518
        %v1520 = vsel %vm1269, %v1431, 0.0
        %v1521 = vadd.f32 %v1519, %v1520
        %v1522 = vsel %vm1269, %v1432, 0.0
        %v1523 = vadd.f32 %v1521, %v1522
        %v1524 = vsel %vm1269, %v1433, 0.0
        %v1525 = vadd.f32 %v1523, %v1524
        %v1526 = vsel %vm1269, %v1434, 0.0
        %v1527 = vadd.f32 %v1525, %v1526
        %v1528 = vsel %vm1269, %v1435, 0.0
        %v1529 = vadd.f32 %v1527, %v1528
        %v1530 = vsel %vm1269, %v1436, 0.0
        %v1531 = vadd.f32 %v1529, %v1530
        %v1532 = vsel %vm1269, %v1437, 0.0
        %v1533 = vadd.f32 %v1531, %v1532
        %v1534 = vsel %vm1269, %v1438, 0.0
        %v1535 = vadd.f32 %v1533, %v1534
        %v1536 = vsel %vm1269, %v1439, 0.0
        %v1537 = vadd.f32 %v1535, %v1536
        %v1538 = vsel %vm1269, %v1440, 0.0
        %v1539 = vadd.f32 %v1537, %v1538
        %v1540 = vsel %vm1269, %v1441, 0.0
        %v1541 = vadd.f32 %v1539, %v1540
        %v1542 = vsel %vm1269, %v1442, 0.0
        %v1543 = vadd.f32 %v1541, %v1542
        %v1544 = vsel %vm1269, %v1443, 0.0
        %v1545 = vadd.f32 %v1543, %v1544
        %v1546 = vsel %vm1269, %v1444, 0.0
        %v1547 = vadd.f32 %v1545, %v1546
        %v1548 = vsel %vm1269, %v1445, 0.0
        %v1549 = vadd.f32 %v1547, %v1548
        %v1550 = vsel %vm1269, %v1446, 0.0
        %v1551 = vadd.f32 %v1549, %v1550
        %v1552 = vsel %vm1269, %v1447, 0.0
        %v1553 = vadd.f32 %v1551, %v1552
        %v1554 = vsel %vm1269, %v1448, 0.0
        %v1555 = vadd.f32 %v1553, %v1554
        %v1556 = vsel %vm1269, %v1449, 0.0
        %v1557 = vadd.f32 %v1555, %v1556
        %v1558 = vsel %vm1269, %v1450, 0.0
        %v1559 = vadd.f32 %v1557, %v1558
        %v1560 = vsel %vm1269, %v1451, 0.0
        %v1561 = vadd.f32 %v1559, %v1560
        %v1562 = vsel %vm1269, %v1452, 0.0
        %v1563 = vadd.f32 %v1561, %v1562
        %v1564 = vsel %vm1269, %v1453, 0.0
        %v1565 = vadd.f32 %v1563, %v1564
        %v1566 = vsel %vm1269, %v1454, 0.0
        %v1567 = vadd.f32 %v1565, %v1566
        %v1568 = vsel %vm1269, %v1455, 0.0
        %v1569 = vadd.f32 %v1567, %v1568
        %v1570 = vsel %vm1269, %v1456, 0.0
        %v1571 = vadd.f32 %v1569, %v1570
        %v1572 = vsel %vm1269, %v1457, 0.0
        %v1573 = vadd.f32 %v1571, %v1572
        %v1574 = vsel %vm1269, %v1458, 0.0
        %v1575 = vadd.f32 %v1573, %v1574
        %v1576 = vsel %vm1269, %v1459, 0.0
        %v1577 = vadd.f32 %v1575, %v1576
        %v1578 = vsel %vm1269, %v1460, 0.0
        %v1579 = vadd.f32 %v1577, %v1578
        %v1580 = vsel %vm1269, %v1461, 0.0
        %v1581 = vadd.f32 %v1579, %v1580
        %v1582 = vsel %vm1269, %v1462, 0.0
        %v1583 = vadd.f32 %v1581, %v1582
        %v1584 = vsel %vm1269, %v1463, 0.0
        %v1585 = vadd.f32 %v1583, %v1584
        %v1586 = vsel %vm1269, %v1464, 0.0
        %v1587 = vadd.f32 %v1585, %v1586
        %v1588 = vsel %vm1269, %v1465, 0.0
        %v1589 = vadd.f32 %v1587, %v1588
        %v1590 = vsel %vm1269, %v1466, 0.0
        %v1591 = vadd.f32 %v1589, %v1590
        %v1592 = vsel %vm1269, %v1467, 0.0
        %v1593 = vadd.f32 %v1591, %v1592
        %v1594 = vsel %vm1269, %v1468, 0.0
        %v1595 = vadd.f32 %v1593, %v1594
        %v1596 = vrot.slane %v1595, 4
        %v1597 = vadd.f32 %v1595, %v1596
        %v1598 = vrot.slane %v1597, 2
        %v1599 = vadd.f32 %v1597, %v1598
        %v1600 = vrot.slane %v1599, 1
        %v1601 = vadd.f32 %v1599, %v1600
        %1602 = vst.msk [vmem:[%s220 + $0x1] sm:$0x1] %vm1403, %v1601
        %s1603 = smul.u32 64, %s26
        %p1604 = scmp.lt.s32.totalorder %s25, 1
        %s1605 = scalar_select %p1604, %s25, 1
        %p1606 = scmp.lt.s32.totalorder %s1603, 63
        %s1607 = scalar_select %p1606, %s1603, 63
        %s1608 = smul.addr %s1605, 64
        %s1609 = sadd.s32 %s1607, %s1608
        %s1610 = smul.addr %s1609, 4
        %s1611 = scalar_lea.vmem %s2, %s1610
        %s1612 = sand.u32 %s120, 1
        %s1613 = scalar_lea.sflag [#allocation4], %s1612
        %s1614 = sand.u32 %s120, 1
        %s1615 = smul.addr %s1614, 2
        %s1616 = scalar_lea.vmem [#allocation5], %s1615
        // Predicated region
        $region33: #{tpu_custom_call.1} parent=27 // pred_check
          %p1617 = pneg %p102
        $region34: #{tpu_custom_call.1} parent=27 // pred_check_branch
          %1619 = sbr.rel (%p1617) target = $region36
        $region35: #{tpu_custom_call.1} parent=27 // pred_region
          %s1620 = smul.u32 64, %s26
        $region36: #{tpu_custom_call.1} parent=27 // pred_fallthru
          _
        // Predicated region
        $region37: #{tpu_custom_call.1} parent=27 // pred_check
          %p1621 = pneg %p130
        $region38: #{tpu_custom_call.1} parent=27 // pred_check_branch
          %1623 = sbr.rel (%p1621) target = $region40
        $region39: #{tpu_custom_call.1} parent=27 // pred_region
          %s1625 = ssub.s32 32, 32
          %1626 = vsyncadd %s1613, %s1625
          %s1627 = sadd.s32 %s26, %s25
          %s1628 = smul.addr %s1627, 32
          %s1629 = scalar_lea.hbm %s3, %s1628
          %s1631 = sshll.u32 %s1616, 4
          %s1632 = int_to_ptr.vmem [resolvable:$true] %s1631
          %1634 = dma.vmem_to_hbm [thread:$0]  %s1632, 32, %s1629, %s1613
        $region40: #{tpu_custom_call.1} parent=27 // pred_fallthru
          _
      $region28: #{tpu_custom_call.1} parent=5 // pred_fallthru
        _
      %p1635 = scmp.le.s32.totalorder 2, %s16
      // Predicated region
      $region41: #{tpu_custom_call.1} parent=5 // pred_check
        %p1636 = pneg %p1635
      $region42: #{tpu_custom_call.1} parent=5 // pred_check_branch
        %1638 = sbr.rel (%p1636) target = $region44
      $region43: #{tpu_custom_call.1} parent=5 // pred_region
        %s1639 = ssub.s32 %s16, 2
        // Predicated region
        $region45: #{tpu_custom_call.1} parent=43 // pred_check
          %p1640 = pneg %p108
        $region46: #{tpu_custom_call.1} parent=43 // pred_check_branch
          %1642 = sbr.rel (%p1640) target = $region48
        $region47: #{tpu_custom_call.1} parent=43 // pred_region
          %s1643 = smul.u32 64, %s28
          %p1644 = scmp.lt.s32.totalorder %s27, 1
          %s1645 = scalar_select %p1644, %s27, 1
          %p1646 = scmp.lt.s32.totalorder %s1643, 63
          %s1647 = scalar_select %p1646, %s1643, 63
          %s1648 = smul.addr %s1645, 64
          %s1649 = sadd.s32 %s1647, %s1648
          %s1650 = smul.addr %s1649, 4
          %s1651 = scalar_lea.vmem %s2, %s1650
        $region48: #{tpu_custom_call.1} parent=43 // pred_fallthru
          _
        // Predicated region
        $region49: #{tpu_custom_call.1} parent=43 // pred_check
          %p1652 = pneg %p136
        $region50: #{tpu_custom_call.1} parent=43 // pred_check_branch
          %1654 = sbr.rel (%p1652) target = $region52
        $region51: #{tpu_custom_call.1} parent=43 // pred_region
          %s1655 = sand.u32 %s121, 1
          %s1656 = scalar_lea.sflag [#allocation4], %s1655
          %s1657 = sand.u32 %s121, 1
          %s1658 = smul.addr %s1657, 2
          %s1659 = scalar_lea.vmem [#allocation5], %s1658
          %1660 = dma.done %s1656, 32
        $region52: #{tpu_custom_call.1} parent=43 // pred_fallthru
          _
      $region44: #{tpu_custom_call.1} parent=5 // pred_fallthru
        _
    $region6: #{tpu_custom_call.1} parent=1 // loop_footer
      %s20 = sadd.s32 1, %s16
    $region7: #{tpu_custom_call.1} parent=1 // loop_footer_branch
      %15 = sbr.rel target = $region3
    $region8: #{tpu_custom_call.1} parent=1 // loop_exit
      _
    %1661 = vsyncpa [#allocation3], 1
    %s1662 = scalar_lea.sflag [#allocation3], 1
    %1663 = vsyncpa %s1662, 1
    %1664 = vsyncpa [#allocation4], 1
    %s1665 = scalar_lea.sflag [#allocation4], 1
    %1666 = vsyncpa %s1665, 1

</llo_original>
